<compile_context>
chip_gen: v7x
topology: tpu7x:2x2x1
jax: 0.10.0
libtpu: 0.0.40
codegen_flags: <defaults>
</compile_context>

<pallas_src>
import jax
import jax.numpy as jnp
from jax.experimental import pallas as pl
from jax.experimental.pallas import tpu as pltpu

EPS = 1e-5  # PyTorch BatchNorm2d default eps


def _round_up(v, m):
    return (v + m - 1) // m * m


def down_conv(x_nchw, params):
    """DownConv forward. x_nchw: (N, Cin, H, W) float32 with H, W even."""
    w1, b1, g1, be1, w2, b2, g2, be2 = params
    del b1, b2  # cancelled exactly by the batch-mean subtraction of training-mode BatchNorm
    N, Cin, H, W = x_nchw.shape
    Hp, Wp = H // 2, W // 2
    HWp = Hp * Wp
    Cout = w1.shape[0]
    Cp = _round_up(Cout, 128)          # lane/MXU-friendly padded channel count
    f32, bf16 = jnp.float32, jnp.bfloat16

    # -------------------- wrapper-side parameter prep (tiny tensors) --------------------
    def prep_w(w, ci_pad):
        # (Cout, Ci, 3, 3) -> tap-major (9, ci_pad, Cp) bf16, zero-padded channels.
        co, ci = w.shape[0], w.shape[1]
        wk = jnp.transpose(w, (2, 3, 1, 0)).reshape(9, ci, co)
        wk = jnp.pad(wk, ((0, 0), (0, ci_pad - ci), (0, Cp - co)))
        return wk.astype(bf16)

    w1p = prep_w(w1, Cin)                                            # (9, Cin, Cp)
    w2p = prep_w(w2, Cp)                                             # (9, Cp,  Cp)
    vecp = lambda v: jnp.pad(v.reshape(1, -1).astype(f32), ((0, 0), (0, Cp - Cout)))
    g1p, be1p, g2p, be2p = vecp(g1), vecp(be1), vecp(g2), vecp(be2)  # (1, Cp) each

    # Single HBM layout op on the input: NCHW -> NHWC, then a FREE reshape that folds each
    # horizontal pooling pair (W, C) -> (Wp, 2C) onto lanes so the pool is done in-kernel.
    x = jnp.transpose(x_nchw, (0, 2, 3, 1)).reshape(N, H, Wp, 2 * Cin)

    # -------------------- shared in-kernel helpers --------------------
    def conv3x3_taps(pad_ref, w_ref, cin):
        # 9 accumulated bf16 matmuls (no im2col scratch), f32 accumulation.
        acc = jnp.zeros((HWp, Cp), f32)
        for dy in range(3):
            for dx in range(3):
                k = dy * 3 + dx
                win = pad_ref[dy:dy + Hp, dx:dx + Wp, :]             # (Hp, Wp, cin) bf16
                acc = acc + jnp.dot(win.reshape(HWp, cin), w_ref[k],
                                    preferred_element_type=f32)
        return acc                                                   # (HWp, Cp) f32

    def zero_halo_and_fill(pad_ref, interior, cin):
        # Zero only the 1-pixel halo (4 thin stores); interior overwritten with the activations.
        zrow = jnp.zeros((1, Wp + 2, cin), bf16)
        zcol = jnp.zeros((Hp + 2, 1, cin), bf16)
        pad_ref[0:1, :, :] = zrow
        pad_ref[Hp + 1:Hp + 2, :, :] = zrow
        pad_ref[:, 0:1, :] = zcol
        pad_ref[:, Wp + 1:Wp + 2, :] = zcol
        pad_ref[1:Hp + 1, 1:Wp + 1, :] = interior.astype(bf16)

    def band_stats(acc):
        # Exact two-pass stats on the VMEM-resident band: (mean_b, M2_b) per channel.
        mean = jnp.sum(acc, axis=0, keepdims=True) * (1.0 / HWp)     # (1, Cp)
        d = acc - mean
        m2 = jnp.sum(d * d, axis=0, keepdims=True)                   # (1, Cp)
        return mean, m2

    def combine_stats(st):
        # Chan's parallel-variance combine of per-band (mean, M2) -> full-batch biased stats.
        means = st[:, 0:1, :]                                        # (N, 1, Cp)
        m2s = st[:, 1:2, :]                                          # (N, 1, Cp)
        gm = jnp.mean(means, axis=0)                                 # (1, Cp)  (equal band sizes)
        dm = means - gm
        m2 = jnp.sum(m2s, axis=0) + HWp * jnp.sum(dm * dm, axis=0)   # (1, Cp)
        var = m2 * (1.0 / (N * HWp))
        return gm, var

    def bn_scale_shift(gm, var, g_ref, be_ref):
        scale = g_ref[...] * jax.lax.rsqrt(var + EPS)
        shift = be_ref[...] - gm * scale
        return scale, shift

    # -------------------- kernel bodies --------------------
    def k1(x_ref, w1_ref, y1_ref, st1_ref, pad_ref):
        # MaxPool2d(2) fully in-kernel: horizontal pair-max on the lane fold, vertical pair-max
        # via a free split of the major H axis.
        xb = x_ref[0]                                                # (H, Wp, 2*Cin)
        hmax = jnp.maximum(xb[..., :Cin], xb[..., Cin:])             # (H, Wp, Cin)
        hm = hmax.reshape(Hp, 2, Wp, Cin)
        pooled = jnp.maximum(hm[:, 0], hm[:, 1])                     # (Hp, Wp, Cin)
        zero_halo_and_fill(pad_ref, pooled, Cin)
        acc = conv3x3_taps(pad_ref, w1_ref, Cin)                     # conv1, pre-BN
        y1_ref[0] = acc
        mean, m2 = band_stats(acc)
        st1_ref[0, 0:1, :] = mean
        st1_ref[0, 1:2, :] = m2

    def k2(y1_ref, st1_ref, g1_ref, be1_ref, w2_ref, y2_ref, st2_ref, pad_ref):
        gm, var = combine_stats(st1_ref[...])
        scale, shift = bn_scale_shift(gm, var, g1_ref, be1_ref)
        a = jnp.maximum(y1_ref[0] * scale + shift, 0.0)              # BN1 + ReLU, (HWp, Cp)
        zero_halo_and_fill(pad_ref, a.reshape(Hp, Wp, Cp), Cp)
        acc = conv3x3_taps(pad_ref, w2_ref, Cp)                      # conv2, pre-BN
        y2_ref[0] = acc
        mean, m2 = band_stats(acc)
        st2_ref[0, 0:1, :] = mean
        st2_ref[0, 1:2, :] = m2

    def k3(y2_ref, st2_ref, g2_ref, be2_ref, o_ref):
        gm, var = combine_stats(st2_ref[...])
        scale, shift = bn_scale_shift(gm, var, g2_ref, be2_ref)
        o_ref[0] = jnp.maximum(y2_ref[0] * scale + shift, 0.0)       # BN2 + ReLU, lane-dense (Cp)

    # -------------------- generation-aware scoped-VMEM budget --------------------
    band_bytes = (
        4 * (H * Wp * 2 * Cin)                          # f32 input band
        + 4 * 2 * (HWp * Cp + 2 * Cp)                   # f32 raw band + stats (in and out)
        + 2 * ((Hp + 2) * (Wp + 2) * Cp                 # bf16 pad scratch
               + 9 * Cp * Cp + 9 * Cin * Cp))           # bf16 tap weights

    def vmem_limit(need_bytes):
        try:
            phys = pltpu.get_tpu_info().vmem_capacity_bytes          # v5e/v6e: 128 MiB, v7x: 64 MiB
        except Exception:
            phys = 64 * 1024 * 1024                                  # conservative fallback (v7x)
        return int(min(int(0.85 * phys), max(16 * 1024 * 1024, need_bytes)))

    cparams = pltpu.CompilerParams(dimension_semantics=("parallel",),
                                   vmem_limit_bytes=vmem_limit(4 * band_bytes))

    band3 = lambda n: (n, 0, 0)
    full3 = lambda n: (0, 0, 0)
    full2 = lambda n: (0, 0)

    # -------------------- K1: pool + conv1 + BN1 partial stats --------------------
    y1_raw, st1 = pl.pallas_call(
        k1,
        grid=(N,),
        in_specs=[pl.BlockSpec((1, H, Wp, 2 * Cin), lambda n: (n, 0, 0, 0)),
                  pl.BlockSpec((9, Cin, Cp), full3)],
        out_specs=(pl.BlockSpec((1, HWp, Cp), band3),
                   pl.BlockSpec((1, 2, Cp), band3)),
        out_shape=(jax.ShapeDtypeStruct((N, HWp, Cp), f32),
                   jax.ShapeDtypeStruct((N, 2, Cp), f32)),
        scratch_shapes=[pltpu.VMEM((Hp + 2, Wp + 2, Cin), bf16)],
        compiler_params=cparams,
    )(x, w1p)

    # -------------------- K2: BN1 + ReLU + conv2 + BN2 partial stats --------------------
    y2_raw, st2 = pl.pallas_call(
        k2,
        grid=(N,),
        in_specs=[pl.BlockSpec((1, HWp, Cp), band3),
                  pl.BlockSpec((N, 2, Cp), full3),
                  pl.BlockSpec((1, Cp), full2),
                  pl.BlockSpec((1, Cp), full2),
                  pl.BlockSpec((9, Cp, Cp), full3)],
        out_specs=(pl.BlockSpec((1, HWp, Cp), band3),
                   pl.BlockSpec((1, 2, Cp), band3)),
        out_shape=(jax.ShapeDtypeStruct((N, HWp, Cp), f32),
                   jax.ShapeDtypeStruct((N, 2, Cp), f32)),
        scratch_shapes=[pltpu.VMEM((Hp + 2, Wp + 2, Cp), bf16)],
        compiler_params=cparams,
    )(y1_raw, st1, g1p, be1p, w2p)

    # -------------------- K3: BN2 + ReLU + store --------------------
    out = pl.pallas_call(
        k3,
        grid=(N,),
        in_specs=[pl.BlockSpec((1, HWp, Cp), band3),
                  pl.BlockSpec((N, 2, Cp), full3),
                  pl.BlockSpec((1, Cp), full2),
                  pl.BlockSpec((1, Cp), full2)],
        out_specs=pl.BlockSpec((1, HWp, Cp), band3),
        out_shape=jax.ShapeDtypeStruct((N, HWp, Cp), f32),
        compiler_params=cparams,
    )(y2_raw, st2, g2p, be2p)

    # Free reshape, drop the zero-padded channels, back to the module's NCHW boundary.
    out = out.reshape(N, Hp, Wp, Cp)[..., :Cout]
    return jnp.transpose(out, (0, 3, 1, 2))


def down_conv_reference(x_nchw, params):
    """Pure-JAX f32 reference (same training-mode BN semantics, conv bias included)."""
    w1, b1, g1, be1, w2, b2, g2, be2 = params
    x = jnp.transpose(x_nchw, (0, 2, 3, 1))
    x = jax.lax.reduce_window(x, -jnp.inf, jax.lax.max,
                              (1, 2, 2, 1), (1, 2, 2, 1), 'VALID')

    def block(x, w, b, g, be):
        wk = jnp.transpose(w, (2, 3, 1, 0))                          # HWIO
        y = jax.lax.conv_general_dilated(
            x, wk, (1, 1), 'SAME',
            dimension_numbers=('NHWC', 'HWIO', 'NHWC'),
            precision=jax.lax.Precision.HIGHEST) + b
        mean = jnp.mean(y, axis=(0, 1, 2))
        var = jnp.mean((y - mean) ** 2, axis=(0, 1, 2))
        y = (y - mean) * jax.lax.rsqrt(var + EPS) * g + be
        return jnp.maximum(y, 0.0)

    x = block(x, w1, b1, g1, be1)
    x = block(x, w2, b2, g2, be2)
    return jnp.transpose(x, (0, 3, 1, 2))


if __name__ == "__main__":
    N, Cin, Cout, H, W = 2, 4, 8, 16, 16
    key = jax.random.PRNGKey(0)
    ks = jax.random.split(key, 9)

    x = jax.random.normal(ks[0], (N, Cin, H, W), jnp.float32)
    # deterministic synthetic parameters (shapes from the module's __init__)
    w1 = 0.1 * jax.random.normal(ks[1], (Cout, Cin, 3, 3), jnp.float32)
    b1 = 0.1 * jax.random.normal(ks[2], (Cout,), jnp.float32)
    g1 = 1.0 + 0.1 * jax.random.normal(ks[3], (Cout,), jnp.float32)
    be1 = 0.1 * jax.random.normal(ks[4], (Cout,), jnp.float32)
    w2 = 0.1 * jax.random.normal(ks[5], (Cout, Cout, 3, 3), jnp.float32)
    b2 = 0.1 * jax.random.normal(ks[6], (Cout,), jnp.float32)
    g2 = 1.0 + 0.1 * jax.random.normal(ks[7], (Cout,), jnp.float32)
    be2 = 0.1 * jax.random.normal(ks[8], (Cout,), jnp.float32)
    params = (w1, b1, g1, be1, w2, b2, g2, be2)

    out = jax.block_until_ready(down_conv(x, params))
    assert out.shape == (N, Cout, H // 2, W // 2), out.shape

    ref = jax.block_until_ready(down_conv_reference(x, params))
    max_err = float(jnp.max(jnp.abs(out - ref)))
    # bf16 MXU operands (f32 accumulation, f32 BatchNorm stats) give a few 1e-2 of absolute error
    # on O(1) post-BN activations vs. the f32 HIGHEST-precision reference.
    if not (max_err < 1e-1):
        raise SystemExit(f"mismatch vs reference: max_err={max_err}")
    print("KERNEL_OK")
</pallas_src>

<mosaic_0001>
module attributes {stable_mosaic.version = 11 : i64} {
  func.func @k1(%arg0: i32, %arg1: memref<1x16x8x8xf32, #tpu.memory_space<vmem>>, %arg2: memref<9x4x128xbf16, #tpu.memory_space<vmem>>, %arg3: memref<1x64x128xf32, #tpu.memory_space<vmem>>, %arg4: memref<1x2x128xf32, #tpu.memory_space<vmem>>, %arg5: memref<10x10x4xbf16, #tpu.memory_space<vmem>>) attributes {dimension_semantics = [#tpu.dimension_semantics<parallel>], iteration_bounds = array<i64: 2>, scalar_prefetch = 0 : i64, scratch_operands = 1 : i64, tpu.core_type = #tpu.core_type<tc>, window_params = [{transform_indices = @transform_0, window_bounds = array<i64: 1, 16, 8, 8>}, {pipeline_mode = #tpu.pipeline_mode<synchronous>, transform_indices = @transform_1, window_bounds = array<i64: 9, 4, 128>}, {transform_indices = @transform_2, window_bounds = array<i64: 1, 64, 128>}, {transform_indices = @transform_3, window_bounds = array<i64: 1, 2, 128>}]} {
    %c0 = arith.constant 0 : index
    %c0_0 = arith.constant 0 : index
    %c0_1 = arith.constant 0 : index
    %c0_2 = arith.constant 0 : index
    %0 = vector.load %arg1[%c0, %c0_0, %c0_1, %c0_2] : memref<1x16x8x8xf32, #tpu.memory_space<vmem>>, vector<1x16x8x8xf32>
    %1 = vector.shape_cast %0 : vector<1x16x8x8xf32> to vector<16x8x8xf32>
    %2 = vector.extract_strided_slice %1 {offsets = [0, 0, 0], sizes = [16, 8, 4], strides = [1, 1, 1]} : vector<16x8x8xf32> to vector<16x8x4xf32>
    %3 = vector.extract_strided_slice %1 {offsets = [0, 0, 4], sizes = [16, 8, 4], strides = [1, 1, 1]} : vector<16x8x8xf32> to vector<16x8x4xf32>
    %4 = arith.maximumf %2, %3 : vector<16x8x4xf32>
    %5 = vector.shape_cast %4 : vector<16x8x4xf32> to vector<8x2x8x4xf32>
    %6 = vector.extract_strided_slice %5 {offsets = [0, 0, 0, 0], sizes = [8, 1, 8, 4], strides = [1, 1, 1, 1]} : vector<8x2x8x4xf32> to vector<8x1x8x4xf32>
    %7 = vector.shape_cast %6 : vector<8x1x8x4xf32> to vector<8x8x4xf32>
    %8 = vector.extract_strided_slice %5 {offsets = [0, 1, 0, 0], sizes = [8, 1, 8, 4], strides = [1, 1, 1, 1]} : vector<8x2x8x4xf32> to vector<8x1x8x4xf32>
    %9 = vector.shape_cast %8 : vector<8x1x8x4xf32> to vector<8x8x4xf32>
    %10 = arith.maximumf %7, %9 : vector<8x8x4xf32>
    %cst = arith.constant 0.000000e+00 : bf16
    %11 = vector.broadcast %cst : bf16 to vector<1x10x4xbf16>
    %cst_3 = arith.constant 0.000000e+00 : bf16
    %12 = vector.broadcast %cst_3 : bf16 to vector<10x1x4xbf16>
    %c0_4 = arith.constant 0 : index
    %c0_5 = arith.constant 0 : index
    %c0_6 = arith.constant 0 : index
    %13 = vector.load %arg5[%c0_4, %c0_5, %c0_6] : memref<10x10x4xbf16, #tpu.memory_space<vmem>>, vector<1x10x4xbf16>
    tpu.vector_store %arg5[%c0_4, %c0_5, %c0_6], %11 {strides = array<i32>} : memref<10x10x4xbf16, #tpu.memory_space<vmem>>, vector<1x10x4xbf16>,
    %c9 = arith.constant 9 : index
    %c0_7 = arith.constant 0 : index
    %c0_8 = arith.constant 0 : index
    %14 = vector.load %arg5[%c9, %c0_7, %c0_8] : memref<10x10x4xbf16, #tpu.memory_space<vmem>>, vector<1x10x4xbf16>
    tpu.vector_store %arg5[%c9, %c0_7, %c0_8], %11 {strides = array<i32>} : memref<10x10x4xbf16, #tpu.memory_space<vmem>>, vector<1x10x4xbf16>,
    %c0_9 = arith.constant 0 : index
    %c0_10 = arith.constant 0 : index
    %c0_11 = arith.constant 0 : index
    %15 = vector.load %arg5[%c0_9, %c0_10, %c0_11] : memref<10x10x4xbf16, #tpu.memory_space<vmem>>, vector<10x1x4xbf16>
    tpu.vector_store %arg5[%c0_9, %c0_10, %c0_11], %12 {strides = array<i32>} : memref<10x10x4xbf16, #tpu.memory_space<vmem>>, vector<10x1x4xbf16>,
    %c0_12 = arith.constant 0 : index
    %c9_13 = arith.constant 9 : index
    %c0_14 = arith.constant 0 : index
    %16 = vector.load %arg5[%c0_12, %c9_13, %c0_14] : memref<10x10x4xbf16, #tpu.memory_space<vmem>>, vector<10x1x4xbf16>
    tpu.vector_store %arg5[%c0_12, %c9_13, %c0_14], %12 {strides = array<i32>} : memref<10x10x4xbf16, #tpu.memory_space<vmem>>, vector<10x1x4xbf16>,
    %17 = arith.truncf %10 : vector<8x8x4xf32> to vector<8x8x4xbf16>
    %c1 = arith.constant 1 : index
    %c1_15 = arith.constant 1 : index
    %c0_16 = arith.constant 0 : index
    %18 = vector.load %arg5[%c1, %c1_15, %c0_16] : memref<10x10x4xbf16, #tpu.memory_space<vmem>>, vector<8x8x4xbf16>
    tpu.vector_store %arg5[%c1, %c1_15, %c0_16], %17 {strides = array<i32>} : memref<10x10x4xbf16, #tpu.memory_space<vmem>>, vector<8x8x4xbf16>,
    %cst_17 = arith.constant 0.000000e+00 : f32
    %19 = vector.broadcast %cst_17 : f32 to vector<64x128xf32>
    %c0_18 = arith.constant 0 : index
    %c0_19 = arith.constant 0 : index
    %c0_20 = arith.constant 0 : index
    %20 = vector.load %arg5[%c0_18, %c0_19, %c0_20] : memref<10x10x4xbf16, #tpu.memory_space<vmem>>, vector<8x8x4xbf16>
    %21 = vector.shape_cast %20 : vector<8x8x4xbf16> to vector<64x4xbf16>
    %c0_21 = arith.constant 0 : index
    %c0_22 = arith.constant 0 : index
    %c0_23 = arith.constant 0 : index
    %22 = vector.load %arg2[%c0_21, %c0_22, %c0_23] : memref<9x4x128xbf16, #tpu.memory_space<vmem>>, vector<1x4x128xbf16>
    %23 = vector.shape_cast %22 : vector<1x4x128xbf16> to vector<4x128xbf16>
    %cst_24 = arith.constant dense<0.000000e+00> : vector<64x128xf32>
    %24 = tpu.matmul %21, %23, %cst_24 {dimension_numbers = #tpu.dot_dimension_numbers<[1], [0], [0], [1], [0, 0, 1, 1], [], []>} : vector<64x4xbf16>, vector<4x128xbf16>, vector<64x128xf32> -> vector<64x128xf32>
    %25 = arith.addf %19, %24 : vector<64x128xf32>
    %c0_25 = arith.constant 0 : index
    %c1_26 = arith.constant 1 : index
    %c0_27 = arith.constant 0 : index
    %26 = vector.load %arg5[%c0_25, %c1_26, %c0_27] : memref<10x10x4xbf16, #tpu.memory_space<vmem>>, vector<8x8x4xbf16>
    %27 = vector.shape_cast %26 : vector<8x8x4xbf16> to vector<64x4xbf16>
    %c1_28 = arith.constant 1 : index
    %c0_29 = arith.constant 0 : index
    %c0_30 = arith.constant 0 : index
    %28 = vector.load %arg2[%c1_28, %c0_29, %c0_30] : memref<9x4x128xbf16, #tpu.memory_space<vmem>>, vector<1x4x128xbf16>
    %29 = vector.shape_cast %28 : vector<1x4x128xbf16> to vector<4x128xbf16>
    %cst_31 = arith.constant dense<0.000000e+00> : vector<64x128xf32>
    %30 = tpu.matmul %27, %29, %cst_31 {dimension_numbers = #tpu.dot_dimension_numbers<[1], [0], [0], [1], [0, 0, 1, 1], [], []>} : vector<64x4xbf16>, vector<4x128xbf16>, vector<64x128xf32> -> vector<64x128xf32>
    %31 = arith.addf %25, %30 : vector<64x128xf32>
    %c0_32 = arith.constant 0 : index
    %c2 = arith.constant 2 : index
    %c0_33 = arith.constant 0 : index
    %32 = vector.load %arg5[%c0_32, %c2, %c0_33] : memref<10x10x4xbf16, #tpu.memory_space<vmem>>, vector<8x8x4xbf16>
    %33 = vector.shape_cast %32 : vector<8x8x4xbf16> to vector<64x4xbf16>
    %c2_34 = arith.constant 2 : index
    %c0_35 = arith.constant 0 : index
    %c0_36 = arith.constant 0 : index
    %34 = vector.load %arg2[%c2_34, %c0_35, %c0_36] : memref<9x4x128xbf16, #tpu.memory_space<vmem>>, vector<1x4x128xbf16>
    %35 = vector.shape_cast %34 : vector<1x4x128xbf16> to vector<4x128xbf16>
    %cst_37 = arith.constant dense<0.000000e+00> : vector<64x128xf32>
    %36 = tpu.matmul %33, %35, %cst_37 {dimension_numbers = #tpu.dot_dimension_numbers<[1], [0], [0], [1], [0, 0, 1, 1], [], []>} : vector<64x4xbf16>, vector<4x128xbf16>, vector<64x128xf32> -> vector<64x128xf32>
    %37 = arith.addf %31, %36 : vector<64x128xf32>
    %c1_38 = arith.constant 1 : index
    %c0_39 = arith.constant 0 : index
    %c0_40 = arith.constant 0 : index
    %38 = vector.load %arg5[%c1_38, %c0_39, %c0_40] : memref<10x10x4xbf16, #tpu.memory_space<vmem>>, vector<8x8x4xbf16>
    %39 = vector.shape_cast %38 : vector<8x8x4xbf16> to vector<64x4xbf16>
    %c3 = arith.constant 3 : index
    %c0_41 = arith.constant 0 : index
    %c0_42 = arith.constant 0 : index
    %40 = vector.load %arg2[%c3, %c0_41, %c0_42] : memref<9x4x128xbf16, #tpu.memory_space<vmem>>, vector<1x4x128xbf16>
    %41 = vector.shape_cast %40 : vector<1x4x128xbf16> to vector<4x128xbf16>
    %cst_43 = arith.constant dense<0.000000e+00> : vector<64x128xf32>
    %42 = tpu.matmul %39, %41, %cst_43 {dimension_numbers = #tpu.dot_dimension_numbers<[1], [0], [0], [1], [0, 0, 1, 1], [], []>} : vector<64x4xbf16>, vector<4x128xbf16>, vector<64x128xf32> -> vector<64x128xf32>
    %43 = arith.addf %37, %42 : vector<64x128xf32>
    %c1_44 = arith.constant 1 : index
    %c1_45 = arith.constant 1 : index
    %c0_46 = arith.constant 0 : index
    %44 = vector.load %arg5[%c1_44, %c1_45, %c0_46] : memref<10x10x4xbf16, #tpu.memory_space<vmem>>, vector<8x8x4xbf16>
    %45 = vector.shape_cast %44 : vector<8x8x4xbf16> to vector<64x4xbf16>
    %c4 = arith.constant 4 : index
    %c0_47 = arith.constant 0 : index
    %c0_48 = arith.constant 0 : index
    %46 = vector.load %arg2[%c4, %c0_47, %c0_48] : memref<9x4x128xbf16, #tpu.memory_space<vmem>>, vector<1x4x128xbf16>
    %47 = vector.shape_cast %46 : vector<1x4x128xbf16> to vector<4x128xbf16>
    %cst_49 = arith.constant dense<0.000000e+00> : vector<64x128xf32>
    %48 = tpu.matmul %45, %47, %cst_49 {dimension_numbers = #tpu.dot_dimension_numbers<[1], [0], [0], [1], [0, 0, 1, 1], [], []>} : vector<64x4xbf16>, vector<4x128xbf16>, vector<64x128xf32> -> vector<64x128xf32>
    %49 = arith.addf %43, %48 : vector<64x128xf32>
    %c1_50 = arith.constant 1 : index
    %c2_51 = arith.constant 2 : index
    %c0_52 = arith.constant 0 : index
    %50 = vector.load %arg5[%c1_50, %c2_51, %c0_52] : memref<10x10x4xbf16, #tpu.memory_space<vmem>>, vector<8x8x4xbf16>
    %51 = vector.shape_cast %50 : vector<8x8x4xbf16> to vector<64x4xbf16>
    %c5 = arith.constant 5 : index
    %c0_53 = arith.constant 0 : index
    %c0_54 = arith.constant 0 : index
    %52 = vector.load %arg2[%c5, %c0_53, %c0_54] : memref<9x4x128xbf16, #tpu.memory_space<vmem>>, vector<1x4x128xbf16>
    %53 = vector.shape_cast %52 : vector<1x4x128xbf16> to vector<4x128xbf16>
    %cst_55 = arith.constant dense<0.000000e+00> : vector<64x128xf32>
    %54 = tpu.matmul %51, %53, %cst_55 {dimension_numbers = #tpu.dot_dimension_numbers<[1], [0], [0], [1], [0, 0, 1, 1], [], []>} : vector<64x4xbf16>, vector<4x128xbf16>, vector<64x128xf32> -> vector<64x128xf32>
    %55 = arith.addf %49, %54 : vector<64x128xf32>
    %c2_56 = arith.constant 2 : index
    %c0_57 = arith.constant 0 : index
    %c0_58 = arith.constant 0 : index
    %56 = vector.load %arg5[%c2_56, %c0_57, %c0_58] : memref<10x10x4xbf16, #tpu.memory_space<vmem>>, vector<8x8x4xbf16>
    %57 = vector.shape_cast %56 : vector<8x8x4xbf16> to vector<64x4xbf16>
    %c6 = arith.constant 6 : index
    %c0_59 = arith.constant 0 : index
    %c0_60 = arith.constant 0 : index
    %58 = vector.load %arg2[%c6, %c0_59, %c0_60] : memref<9x4x128xbf16, #tpu.memory_space<vmem>>, vector<1x4x128xbf16>
    %59 = vector.shape_cast %58 : vector<1x4x128xbf16> to vector<4x128xbf16>
    %cst_61 = arith.constant dense<0.000000e+00> : vector<64x128xf32>
    %60 = tpu.matmul %57, %59, %cst_61 {dimension_numbers = #tpu.dot_dimension_numbers<[1], [0], [0], [1], [0, 0, 1, 1], [], []>} : vector<64x4xbf16>, vector<4x128xbf16>, vector<64x128xf32> -> vector<64x128xf32>
    %61 = arith.addf %55, %60 : vector<64x128xf32>
    %c2_62 = arith.constant 2 : index
    %c1_63 = arith.constant 1 : index
    %c0_64 = arith.constant 0 : index
    %62 = vector.load %arg5[%c2_62, %c1_63, %c0_64] : memref<10x10x4xbf16, #tpu.memory_space<vmem>>, vector<8x8x4xbf16>
    %63 = vector.shape_cast %62 : vector<8x8x4xbf16> to vector<64x4xbf16>
    %c7 = arith.constant 7 : index
    %c0_65 = arith.constant 0 : index
    %c0_66 = arith.constant 0 : index
    %64 = vector.load %arg2[%c7, %c0_65, %c0_66] : memref<9x4x128xbf16, #tpu.memory_space<vmem>>, vector<1x4x128xbf16>
    %65 = vector.shape_cast %64 : vector<1x4x128xbf16> to vector<4x128xbf16>
    %cst_67 = arith.constant dense<0.000000e+00> : vector<64x128xf32>
    %66 = tpu.matmul %63, %65, %cst_67 {dimension_numbers = #tpu.dot_dimension_numbers<[1], [0], [0], [1], [0, 0, 1, 1], [], []>} : vector<64x4xbf16>, vector<4x128xbf16>, vector<64x128xf32> -> vector<64x128xf32>
    %67 = arith.addf %61, %66 : vector<64x128xf32>
    %c2_68 = arith.constant 2 : index
    %c2_69 = arith.constant 2 : index
    %c0_70 = arith.constant 0 : index
    %68 = vector.load %arg5[%c2_68, %c2_69, %c0_70] : memref<10x10x4xbf16, #tpu.memory_space<vmem>>, vector<8x8x4xbf16>
    %69 = vector.shape_cast %68 : vector<8x8x4xbf16> to vector<64x4xbf16>
    %c8 = arith.constant 8 : index
    %c0_71 = arith.constant 0 : index
    %c0_72 = arith.constant 0 : index
    %70 = vector.load %arg2[%c8, %c0_71, %c0_72] : memref<9x4x128xbf16, #tpu.memory_space<vmem>>, vector<1x4x128xbf16>
    %71 = vector.shape_cast %70 : vector<1x4x128xbf16> to vector<4x128xbf16>
    %cst_73 = arith.constant dense<0.000000e+00> : vector<64x128xf32>
    %72 = tpu.matmul %69, %71, %cst_73 {dimension_numbers = #tpu.dot_dimension_numbers<[1], [0], [0], [1], [0, 0, 1, 1], [], []>} : vector<64x4xbf16>, vector<4x128xbf16>, vector<64x128xf32> -> vector<64x128xf32>
    %73 = arith.addf %67, %72 : vector<64x128xf32>
    %c0_74 = arith.constant 0 : index
    %c0_75 = arith.constant 0 : index
    %c0_76 = arith.constant 0 : index
    %74 = vector.load %arg3[%c0_74, %c0_75, %c0_76] : memref<1x64x128xf32, #tpu.memory_space<vmem>>, vector<1x64x128xf32>
    %75 = vector.shape_cast %74 : vector<1x64x128xf32> to vector<64x128xf32>
    %76 = vector.shape_cast %73 : vector<64x128xf32> to vector<1x64x128xf32>
    tpu.vector_store %arg3[%c0_74, %c0_75, %c0_76], %76 {strides = array<i32>} : memref<1x64x128xf32, #tpu.memory_space<vmem>>, vector<1x64x128xf32>,
    %cst_77 = arith.constant dense<0.000000e+00> : vector<128xf32>
    %77 = vector.multi_reduction <add>, %73, %cst_77 [0] : vector<64x128xf32> to vector<128xf32>
    %78 = vector.shape_cast %77 : vector<128xf32> to vector<1x128xf32>
    %cst_78 = arith.constant 1.562500e-02 : f32
    %79 = vector.broadcast %cst_78 : f32 to vector<1x128xf32>
    %80 = arith.mulf %78, %79 : vector<1x128xf32>
    %81 = vector.broadcast %80 : vector<1x128xf32> to vector<64x128xf32>
    %82 = arith.subf %73, %81 : vector<64x128xf32>
    %83 = arith.mulf %82, %82 : vector<64x128xf32>
    %cst_79 = arith.constant dense<0.000000e+00> : vector<128xf32>
    %84 = vector.multi_reduction <add>, %83, %cst_79 [0] : vector<64x128xf32> to vector<128xf32>
    %85 = vector.shape_cast %84 : vector<128xf32> to vector<1x128xf32>
    %c0_80 = arith.constant 0 : index
    %c0_81 = arith.constant 0 : index
    %c0_82 = arith.constant 0 : index
    %86 = vector.load %arg4[%c0_80, %c0_81, %c0_82] : memref<1x2x128xf32, #tpu.memory_space<vmem>>, vector<1x1x128xf32>
    %87 = vector.shape_cast %86 : vector<1x1x128xf32> to vector<1x128xf32>
    %88 = vector.shape_cast %80 : vector<1x128xf32> to vector<1x1x128xf32>
    tpu.vector_store %arg4[%c0_80, %c0_81, %c0_82], %88 {strides = array<i32>} : memref<1x2x128xf32, #tpu.memory_space<vmem>>, vector<1x1x128xf32>,
    %c0_83 = arith.constant 0 : index
    %c1_84 = arith.constant 1 : index
    %c0_85 = arith.constant 0 : index
    %89 = vector.load %arg4[%c0_83, %c1_84, %c0_85] : memref<1x2x128xf32, #tpu.memory_space<vmem>>, vector<1x1x128xf32>
    %90 = vector.shape_cast %89 : vector<1x1x128xf32> to vector<1x128xf32>
    %91 = vector.shape_cast %85 : vector<1x128xf32> to vector<1x1x128xf32>
    tpu.vector_store %arg4[%c0_83, %c1_84, %c0_85], %91 {strides = array<i32>} : memref<1x2x128xf32, #tpu.memory_space<vmem>>, vector<1x1x128xf32>,
    return
  }
  func.func @transform_0(%arg0: i32) -> (i32, i32, i32, i32) {
    %c0_i32 = arith.constant 0 : i32
    %c0_i32_0 = arith.constant 0 : i32
    %c0_i32_1 = arith.constant 0 : i32
    %c0_i32_2 = arith.constant 0 : i32
    return %arg0, %c0_i32, %c0_i32_0, %c0_i32_1 : i32, i32, i32, i32
  }
  func.func @transform_1(%arg0: i32) -> (i32, i32, i32) {
    %c0_i32 = arith.constant 0 : i32
    %c0_i32_0 = arith.constant 0 : i32
    %c0_i32_1 = arith.constant 0 : i32
    %c0_i32_2 = arith.constant 0 : i32
    return %c0_i32, %c0_i32_0, %c0_i32_1 : i32, i32, i32
  }
  func.func @transform_2(%arg0: i32) -> (i32, i32, i32) {
    %c0_i32 = arith.constant 0 : i32
    %c0_i32_0 = arith.constant 0 : i32
    %c0_i32_1 = arith.constant 0 : i32
    return %arg0, %c0_i32, %c0_i32_0 : i32, i32, i32
  }
  func.func @transform_3(%arg0: i32) -> (i32, i32, i32) {
    %c0_i32 = arith.constant 0 : i32
    %c0_i32_0 = arith.constant 0 : i32
    %c0_i32_1 = arith.constant 0 : i32
    return %arg0, %c0_i32, %c0_i32_0 : i32, i32, i32
  }
}

</mosaic_0001>

<llo_original>
// kernel: tpu_custom_call.1
$region0: #{tpu_custom_call.1}
  #allocation0 [shape = 'u32[]', space=smem, size = 0x4, offset = 0x4, fixed_abs, tag = 'smem constant byte address 0x4 - core index']
  #allocation1 [shape = 'u32[144,128]{1,0:T(1,128)}', space=vmem, size = 0x12000, scoped, tag = 'internal scratch']
  #allocation2 [shape = 'bf16[10,10,4]{2,1,0:T(8,128)(2,1)}', space=vmem, size = 0xa000, scoped, tag = 'scratch operand']
  %s0 = inlined_call_operand.vmem [shape: f32[2,16,8,8], index: 0, kind: input, shape index: {}]
  %s1 = inlined_call_operand.vmem [shape: bf16[9,4,128], index: 1, kind: input, shape index: {}]
  %s2 = inlined_call_operand.hbm [shape: f32[2,64,128], index: 2, kind: output, shape index: {0}]
  %s3 = inlined_call_operand.hbm [shape: f32[2,2,128], index: 3, kind: output, shape index: {1}]
  %4 = xla_tuple %s2, %s3
  %s5 = sld [smem:[#allocation0]]
  $region49: #{tpu_custom_call.1} parent=0
    _
  %s7 = ssub.s32 1, %s5
  %s8 = scalar_select 0, %s7, %s5
  $region1: #{tpu_custom_call.1} parent=0
    #allocation3 [shape = 'u8[65536]{0}', space=vmem, size = 0x10000, scoped, tag = 'output window, operand 0']
    #allocation4 [shape = 's32[2]{0}', space=sflag, size = 0x8, scoped, tag = 'scoped memory for tpu_custom_call.1']
    #allocation5 [shape = 'u8[2048]{0}', space=vmem, size = 0x800, scoped, tag = 'output window, operand 1']
    #allocation6 [shape = 's32[2]{0}', space=sflag, size = 0x8, scoped, tag = 'scoped memory for tpu_custom_call.1']
    %9 = vsyncpa [#allocation4], 0
    %s10 = scalar_lea.sflag [#allocation4], 1
    %11 = vsyncpa %s10, 0
    %12 = vsyncpa [#allocation6], 0
    %s13 = scalar_lea.sflag [#allocation6], 1
    %14 = vsyncpa %s13, 0
    loop: start=0, step=1, limit=4
    $region2: #{tpu_custom_call.1} parent=1 // loop_pre_header
      _
    $region3: #{tpu_custom_call.1} parent=1 // loop_header
      %s16 = sphi 0, %s20
      %p17 = scmp.ge.s32.totalorder %s16, 4
      %s26 = sphi 0, %s28
      %s29 = sphi 0, %s26
      %s30 = sphi 0, %s29
      %s46 = sphi 0, %s30
      %s50 = sphi 0, %s50
      %s52 = sphi 0, %s50
      %s53 = sphi 0, %s52
      %s67 = sphi 0, %s53
      %s73 = sphi 0, %s75
      %s76 = sphi 0, %s73
      %s77 = sphi 0, %s76
      %s93 = sphi 0, %s77
      %s99 = sphi 0, %s101
      %s102 = sphi 0, %s99
      %s103 = sphi 0, %s102
      %s119 = sphi 0, %s103
    $region4: #{tpu_custom_call.1} parent=1 // loop_header_branch
      %19 = sbr.rel (%p17) target = $region8
    $region5: #{tpu_custom_call.1} parent=1 // loop_body
      %s21 = ssub.s32 %s16, 1
      %s22 = ssub.s32 %s16, 2
      %s23 = sadd.s32 %s16, 1
      %s24 = ssub.s32 %s16, %s23
      %p25 = scmp.eq.s32.totalorder %s24, 0
      %s27 = sadd.s32 %s26, 1
      %s28 = scalar_select %p25, %s26, %s27
      %p31 = pneg %p25
      %p32 = scmp.eq.s32.totalorder %s16, 1
      %p33 = por %p31, %p32
      %p34 = scmp.ne.s32.totalorder %s26, %s29
      %p35 = scmp.eq.s32.totalorder %s16, 0
      %p36 = por %p34, %p35
      %p37 = scmp.ne.s32.totalorder %s26, %s29
      %p38 = scmp.eq.s32.totalorder %s21, 1
      %p39 = por %p37, %p38
      %p40 = scmp.ne.s32.totalorder %s29, %s30
      %p41 = scmp.eq.s32.totalorder %s21, 0
      %p42 = por %p40, %p41
      %p43 = scmp.ne.s32.totalorder %s29, %s30
      %p44 = scmp.eq.s32.totalorder %s22, 1
      %p45 = por %p43, %p44
      %p47 = scmp.ne.s32.totalorder %s30, %s46
      %p48 = scmp.eq.s32.totalorder %s22, 0
      %p49 = por %p47, %p48
      %s51 = sadd.s32 %s50, 1
      %p54 = scmp.eq.s32.totalorder %s16, 1
      %p55 = scmp.ne.s32.totalorder %s50, %s52
      %p56 = scmp.eq.s32.totalorder %s16, 0
      %p57 = por %p55, %p56
      %p58 = scmp.ne.s32.totalorder %s50, %s52
      %p59 = scmp.eq.s32.totalorder %s21, 1
      %p60 = por %p58, %p59
      %p61 = scmp.ne.s32.totalorder %s52, %s53
      %p62 = scmp.eq.s32.totalorder %s21, 0
      %p63 = por %p61, %p62
      %p64 = scmp.ne.s32.totalorder %s52, %s53
      %p65 = scmp.eq.s32.totalorder %s22, 1
      %p66 = por %p64, %p65
      %p68 = scmp.ne.s32.totalorder %s53, %s67
      %p69 = scmp.eq.s32.totalorder %s22, 0
      %p70 = por %p68, %p69
      %s71 = ssub.s32 %s16, %s23
      %p72 = scmp.eq.s32.totalorder %s71, 0
      %s74 = sadd.s32 %s73, 1
      %s75 = scalar_select %p72, %s73, %s74
      %p78 = pneg %p72
      %p79 = scmp.eq.s32.totalorder %s16, 1
      %p80 = por %p78, %p79
      %p81 = scmp.ne.s32.totalorder %s73, %s76
      %p82 = scmp.eq.s32.totalorder %s16, 0
      %p83 = por %p81, %p82
      %p84 = scmp.ne.s32.totalorder %s73, %s76
      %p85 = scmp.eq.s32.totalorder %s21, 1
      %p86 = por %p84, %p85
      %p87 = scmp.ne.s32.totalorder %s76, %s77
      %p88 = scmp.eq.s32.totalorder %s21, 0
      %p89 = por %p87, %p88
      %p90 = scmp.ne.s32.totalorder %s76, %s77
      %p91 = scmp.eq.s32.totalorder %s22, 1
      %p92 = por %p90, %p91
      %p94 = scmp.ne.s32.totalorder %s77, %s93
      %p95 = scmp.eq.s32.totalorder %s22, 0
      %p96 = por %p94, %p95
      %s97 = ssub.s32 %s16, %s23
      %p98 = scmp.eq.s32.totalorder %s97, 0
      %s100 = sadd.s32 %s99, 1
      %s101 = scalar_select %p98, %s99, %s100
      %p104 = pneg %p98
      %p105 = scmp.eq.s32.totalorder %s16, 1
      %p106 = por %p104, %p105
      %p107 = scmp.ne.s32.totalorder %s99, %s102
      %p108 = scmp.eq.s32.totalorder %s16, 0
      %p109 = por %p107, %p108
      %p110 = scmp.ne.s32.totalorder %s99, %s102
      %p111 = scmp.eq.s32.totalorder %s21, 1
      %p112 = por %p110, %p111
      %p113 = scmp.ne.s32.totalorder %s102, %s103
      %p114 = scmp.eq.s32.totalorder %s21, 0
      %p115 = por %p113, %p114
      %p116 = scmp.ne.s32.totalorder %s102, %s103
      %p117 = scmp.eq.s32.totalorder %s22, 1
      %p118 = por %p116, %p117
      %p120 = scmp.ne.s32.totalorder %s103, %s119
      %p121 = scmp.eq.s32.totalorder %s22, 0
      %p122 = por %p120, %p121
      %p123 = scmp.le.s32.totalorder 1, %s16
      %p124 = scmp.lt.s32.totalorder %s16, 3
      %p125 = pnand %p123, %p124
      %p126 = pneg %p125
      // Predicated region
      $region9: #{tpu_custom_call.1} parent=5 // pred_check
        _
      $region10: #{tpu_custom_call.1} parent=5 // pred_check_branch
        %128 = sbr.rel (%p125) target = $region12
      $region11: #{tpu_custom_call.1} parent=5 // pred_region
        %s129 = ssub.s32 %s16, 1
        // Predicated region
        $region13: #{tpu_custom_call.1} parent=11 // pred_check
          %p130 = pneg %p63
        $region14: #{tpu_custom_call.1} parent=11 // pred_check_branch
          %132 = sbr.rel (%p130) target = $region16
        $region15: #{tpu_custom_call.1} parent=11 // pred_region
          _
        $region16: #{tpu_custom_call.1} parent=11 // pred_fallthru
          _
      $region12: #{tpu_custom_call.1} parent=5 // pred_fallthru
        _
      %p133 = scmp.lt.s32.totalorder %s16, 2
      // Predicated region
      $region17: #{tpu_custom_call.1} parent=5 // pred_check
        %p134 = pneg %p133
      $region18: #{tpu_custom_call.1} parent=5 // pred_check_branch
        %136 = sbr.rel (%p134) target = $region20
      $region19: #{tpu_custom_call.1} parent=5 // pred_region
        // Predicated region
        $region21: #{tpu_custom_call.1} parent=19 // pred_check
          %p137 = pneg %p36
        $region22: #{tpu_custom_call.1} parent=19 // pred_check_branch
          %139 = sbr.rel (%p137) target = $region24
        $region23: #{tpu_custom_call.1} parent=19 // pred_region
          %p140 = scmp.lt.s32.totalorder %s16, 1
          %s141 = scalar_select %p140, %s16, 1
          %s142 = smul.addr %s141, 16
          %s143 = smul.addr %s142, 8
          %s144 = scalar_lea.vmem %s0, %s143
        $region24: #{tpu_custom_call.1} parent=19 // pred_fallthru
          _
      $region20: #{tpu_custom_call.1} parent=5 // pred_fallthru
        _
      %p145 = scmp.le.s32.totalorder 1, %s16
      %p146 = scmp.lt.s32.totalorder %s16, 3
      %p147 = pnand %p145, %p146
      %p148 = pneg %p147
      // Predicated region
      $region25: #{tpu_custom_call.1} parent=5 // pred_check
        _
      $region26: #{tpu_custom_call.1} parent=5 // pred_check_branch
        %150 = sbr.rel (%p147) target = $region28
      $region27: #{tpu_custom_call.1} parent=5 // pred_region
        %s151 = ssub.s32 %s16, 1
        %p152 = scmp.lt.s32.totalorder %s21, 1
        %s153 = scalar_select %p152, %s21, 1
        %s154 = smul.addr %s153, 16
        %s155 = smul.addr %s154, 8
        %s156 = scalar_lea.vmem %s0, %s155
        %p157 = pneg %p42
        %p158 = pneg %p39
        %p159 = pneg %p63
        %p160 = pneg %p60
        %p161 = pneg %p89
        %p162 = pneg %p86
        %s163 = sand.u32 %s76, 1
        %s164 = scalar_lea.sflag [#allocation4], %s163
        %s165 = sand.u32 %s76, 1
        %s166 = smul.addr %s165, 64
        %s167 = scalar_lea.vmem [#allocation3], %s166
        %p168 = pneg %p115
        %p169 = pneg %p112
        %s170 = sand.u32 %s102, 1
        %s171 = scalar_lea.sflag [#allocation6], %s170
        %s172 = sand.u32 %s102, 1
        %s173 = smul.addr %s172, 2
        %s174 = scalar_lea.vmem [#allocation5], %s173
        %p175 = scmp.lt.s32.totalorder %s21, 1
        %s176 = scalar_select %p175, %s21, 1
        %s177 = smul.addr %s176, 16
        %s178 = smul.addr %s177, 8
        %s179 = scalar_lea.vmem %s0, %s178
        %v181 = vld [vmem:[%s179] sm:$0xff]
        %v182 = vld [vmem:[%s179 + $0x8] sm:$0xff]
        %v183 = vld [vmem:[%s179 + $0x10] sm:$0xff]
        %v184 = vld [vmem:[%s179 + $0x18] sm:$0xff]
        %v185 = vld [vmem:[%s179 + $0x20] sm:$0xff]
        %v186 = vld [vmem:[%s179 + $0x28] sm:$0xff]
        %v187 = vld [vmem:[%s179 + $0x30] sm:$0xff]
        %v188 = vld [vmem:[%s179 + $0x38] sm:$0xff]
        %v189 = vld [vmem:[%s179 + $0x40] sm:$0xff]
        %v190 = vld [vmem:[%s179 + $0x48] sm:$0xff]
        %v191 = vld [vmem:[%s179 + $0x50] sm:$0xff]
        %v192 = vld [vmem:[%s179 + $0x58] sm:$0xff]
        %v193 = vld [vmem:[%s179 + $0x60] sm:$0xff]
        %v194 = vld [vmem:[%s179 + $0x68] sm:$0xff]
        %v195 = vld [vmem:[%s179 + $0x70] sm:$0xff]
        %v196 = vld [vmem:[%s179 + $0x78] sm:$0xff]
        %213 = vrot.lane.b32.xlu0 %v181, 124
        %v214 = vpop.permute.xlu0 %213
        %215 = vrot.lane.b32.xlu0 %v182, 124
        %v216 = vpop.permute.xlu0 %215
        %217 = vrot.lane.b32.xlu0 %v183, 124
        %v218 = vpop.permute.xlu0 %217
        %219 = vrot.lane.b32.xlu0 %v184, 124
        %v220 = vpop.permute.xlu0 %219
        %221 = vrot.lane.b32.xlu0 %v185, 124
        %v222 = vpop.permute.xlu0 %221
        %223 = vrot.lane.b32.xlu0 %v186, 124
        %v224 = vpop.permute.xlu0 %223
        %225 = vrot.lane.b32.xlu0 %v187, 124
        %v226 = vpop.permute.xlu0 %225
        %227 = vrot.lane.b32.xlu0 %v188, 124
        %v228 = vpop.permute.xlu0 %227
        %229 = vrot.lane.b32.xlu0 %v189, 124
        %v230 = vpop.permute.xlu0 %229
        %231 = vrot.lane.b32.xlu0 %v190, 124
        %v232 = vpop.permute.xlu0 %231
        %233 = vrot.lane.b32.xlu0 %v191, 124
        %v234 = vpop.permute.xlu0 %233
        %235 = vrot.lane.b32.xlu0 %v192, 124
        %v236 = vpop.permute.xlu0 %235
        %237 = vrot.lane.b32.xlu0 %v193, 124
        %v238 = vpop.permute.xlu0 %237
        %239 = vrot.lane.b32.xlu0 %v194, 124
        %v240 = vpop.permute.xlu0 %239
        %241 = vrot.lane.b32.xlu0 %v195, 124
        %v242 = vpop.permute.xlu0 %241
        %243 = vrot.lane.b32.xlu0 %v196, 124
        %v244 = vpop.permute.xlu0 %243
        %v261 = vmax.f32 %v181, %v214
        %v262 = vmax.f32 %v182, %v216
        %v263 = vmax.f32 %v183, %v218
        %v264 = vmax.f32 %v184, %v220
        %v265 = vmax.f32 %v185, %v222
        %v266 = vmax.f32 %v186, %v224
        %v267 = vmax.f32 %v187, %v226
        %v268 = vmax.f32 %v188, %v228
        %v269 = vmax.f32 %v189, %v230
        %v270 = vmax.f32 %v190, %v232
        %v271 = vmax.f32 %v191, %v234
        %v272 = vmax.f32 %v192, %v236
        %v273 = vmax.f32 %v193, %v238
        %v274 = vmax.f32 %v194, %v240
        %v275 = vmax.f32 %v195, %v242
        %v276 = vmax.f32 %v196, %v244
        %v277 = vmax.f32 %v261, %v262
        %v278 = vmax.f32 %v263, %v264
        %v279 = vmax.f32 %v265, %v266
        %v280 = vmax.f32 %v267, %v268
        %v281 = vmax.f32 %v269, %v270
        %v282 = vmax.f32 %v271, %v272
        %v283 = vmax.f32 %v273, %v274
        %v284 = vmax.f32 %v275, %v276
        %vm285 = vcmask 27648
        %286 = vst.msk [vmem:[#allocation2] sm:$0xf] %vm285, 0
        %vm287 = vcmask 24576
        %288 = vst.msk [vmem:[#allocation2 + $0x4] sm:$0x1] %vm287, 0
        %s289 = scalar_lea.vmem [#allocation2], 72
        %290 = vst.msk [vmem:[%s289] sm:$0xf] %vm285, 0
        %291 = vst.msk [vmem:[%s289 + $0x4] sm:$0x1] %vm287, 0
        %vm292 = vcmask 24576
        %vm293 = vsmask.f32 256
        %vm294 = vmand %vm292, %vm293
        %v295 = vld [vmem:[#allocation2] sm:$0x1]
        %v296 = vsel %vm294, 0, %v295
        %297 = vst [vmem:[#allocation2] sm:$0x1] %v296
        %v298 = vld [vmem:[#allocation2 + $0x8] sm:$0x1]
        %v299 = vsel %vm294, 0, %v298
        %300 = vst [vmem:[#allocation2 + $0x8] sm:$0x1] %v299
        %v301 = vld [vmem:[#allocation2 + $0x10] sm:$0x1]
        %v302 = vsel %vm294, 0, %v301
        %303 = vst [vmem:[#allocation2 + $0x10] sm:$0x1] %v302
        %v304 = vld [vmem:[#allocation2 + $0x18] sm:$0x1]
        %v305 = vsel %vm294, 0, %v304
        %306 = vst [vmem:[#allocation2 + $0x18] sm:$0x1] %v305
        %v307 = vld [vmem:[#allocation2 + $0x20] sm:$0x1]
        %v308 = vsel %vm294, 0, %v307
        %309 = vst [vmem:[#allocation2 + $0x20] sm:$0x1] %v308
        %v310 = vld [vmem:[#allocation2 + $0x28] sm:$0x1]
        %v311 = vsel %vm294, 0, %v310
        %312 = vst [vmem:[#allocation2 + $0x28] sm:$0x1] %v311
        %v313 = vld [vmem:[#allocation2 + $0x30] sm:$0x1]
        %v314 = vsel %vm294, 0, %v313
        %315 = vst [vmem:[#allocation2 + $0x30] sm:$0x1] %v314
        %v316 = vld [vmem:[#allocation2 + $0x38] sm:$0x1]
        %v317 = vsel %vm294, 0, %v316
        %318 = vst [vmem:[#allocation2 + $0x38] sm:$0x1] %v317
        %v319 = vld [vmem:[#allocation2 + $0x40] sm:$0x1]
        %v320 = vsel %vm294, 0, %v319
        %321 = vst [vmem:[#allocation2 + $0x40] sm:$0x1] %v320
        %v322 = vld [vmem:[#allocation2 + $0x48] sm:$0x1]
        %v323 = vsel %vm294, 0, %v322
        %324 = vst [vmem:[#allocation2 + $0x48] sm:$0x1] %v323
        %vm325 = vsmask.f32 7938
        %vm326 = vmand %vm292, %vm325
        %v327 = vld [vmem:[#allocation2 + $0x4] sm:$0x1]
        %v328 = vsel %vm326, 0, %v327
        %329 = vst [vmem:[#allocation2 + $0x4] sm:$0x1] %v328
        %v330 = vld [vmem:[#allocation2 + $0xc] sm:$0x1]
        %v331 = vsel %vm326, 0, %v330
        %332 = vst [vmem:[#allocation2 + $0xc] sm:$0x1] %v331
        %v333 = vld [vmem:[#allocation2 + $0x14] sm:$0x1]
        %v334 = vsel %vm326, 0, %v333
        %335 = vst [vmem:[#allocation2 + $0x14] sm:$0x1] %v334
        %v336 = vld [vmem:[#allocation2 + $0x1c] sm:$0x1]
        %v337 = vsel %vm326, 0, %v336
        %338 = vst [vmem:[#allocation2 + $0x1c] sm:$0x1] %v337
        %v339 = vld [vmem:[#allocation2 + $0x24] sm:$0x1]
        %v340 = vsel %vm326, 0, %v339
        %341 = vst [vmem:[#allocation2 + $0x24] sm:$0x1] %v340
        %v342 = vld [vmem:[#allocation2 + $0x2c] sm:$0x1]
        %v343 = vsel %vm326, 0, %v342
        %344 = vst [vmem:[#allocation2 + $0x2c] sm:$0x1] %v343
        %v345 = vld [vmem:[#allocation2 + $0x34] sm:$0x1]
        %v346 = vsel %vm326, 0, %v345
        %347 = vst [vmem:[#allocation2 + $0x34] sm:$0x1] %v346
        %v348 = vld [vmem:[#allocation2 + $0x3c] sm:$0x1]
        %v349 = vsel %vm326, 0, %v348
        %350 = vst [vmem:[#allocation2 + $0x3c] sm:$0x1] %v349
        %v351 = vld [vmem:[#allocation2 + $0x44] sm:$0x1]
        %v352 = vsel %vm326, 0, %v351
        %353 = vst [vmem:[#allocation2 + $0x44] sm:$0x1] %v352
        %v354 = vld [vmem:[#allocation2 + $0x4c] sm:$0x1]
        %v355 = vsel %vm326, 0, %v354
        %356 = vst [vmem:[#allocation2 + $0x4c] sm:$0x1] %v355
        %v357 = vpack.c.bf16 %v277, %v277
        %v358 = vpack.c.bf16 %v278, %v278
        %v359 = vpack.c.bf16 %v279, %v279
        %v360 = vpack.c.bf16 %v280, %v280
        %v361 = vpack.c.bf16 %v281, %v281
        %v362 = vpack.c.bf16 %v282, %v282
        %v363 = vpack.c.bf16 %v283, %v283
        %v364 = vpack.c.bf16 %v284, %v284
        %v373 = vunpack.c.l.b16 %v357
        %v374 = vunpack.c.l.b16 %v358
        %v375 = vunpack.c.l.b16 %v359
        %v376 = vunpack.c.l.b16 %v360
        %v377 = vunpack.c.l.b16 %v361
        %v378 = vunpack.c.l.b16 %v362
        %v379 = vunpack.c.l.b16 %v363
        %v380 = vunpack.c.l.b16 %v364
        %v381 = vpack.c.b16 %v373, %v373
        %v382 = vpack.c.b16 %v374, %v374
        %v383 = vpack.c.b16 %v375, %v375
        %v384 = vpack.c.b16 %v376, %v376
        %v385 = vpack.c.b16 %v377, %v377
        %v386 = vpack.c.b16 %v378, %v378
        %v387 = vpack.c.b16 %v379, %v379
        %v388 = vpack.c.b16 %v380, %v380
        %v390 = vshrl.u32 %v381, 16
        %v392 = vrot.slane %v390, 7
        %v393 = vshll.u32 %v381, 16
        %v395 = vor.u32 %v392, %v393
        %v396 = vrot.slane %v392, 4
        %v398 = vshrl.u32 %v382, 16
        %v400 = vrot.slane %v398, 7
        %v401 = vshll.u32 %v382, 16
        %v403 = vor.u32 %v400, %v401
        %v404 = vrot.slane %v400, 4
        %v406 = vshrl.u32 %v383, 16
        %v408 = vrot.slane %v406, 7
        %v409 = vshll.u32 %v383, 16
        %v411 = vor.u32 %v408, %v409
        %v412 = vrot.slane %v408, 4
        %v414 = vshrl.u32 %v384, 16
        %v416 = vrot.slane %v414, 7
        %v417 = vshll.u32 %v384, 16
        %v419 = vor.u32 %v416, %v417
        %v420 = vrot.slane %v416, 4
        %v422 = vshrl.u32 %v385, 16
        %v424 = vrot.slane %v422, 7
        %v425 = vshll.u32 %v385, 16
        %v427 = vor.u32 %v424, %v425
        %v428 = vrot.slane %v424, 4
        %v430 = vshrl.u32 %v386, 16
        %v432 = vrot.slane %v430, 7
        %v433 = vshll.u32 %v386, 16
        %v435 = vor.u32 %v432, %v433
        %v436 = vrot.slane %v432, 4
        %v438 = vshrl.u32 %v387, 16
        %v440 = vrot.slane %v438, 7
        %v441 = vshll.u32 %v387, 16
        %v443 = vor.u32 %v440, %v441
        %v444 = vrot.slane %v440, 4
        %v446 = vshrl.u32 %v388, 16
        %v448 = vrot.slane %v446, 7
        %v449 = vshll.u32 %v388, 16
        %v451 = vor.u32 %v448, %v449
        %v452 = vrot.slane %v448, 4
        %s469 = scalar_lea.vmem [#allocation2], 8
        %vm470 = vcmask 27648
        %vm471 = vmand %vm470, %vm325
        %v472 = vld [vmem:[%s469] sm:$0xf]
        %v473 = vsel %vm471, %v395, %v472
        %474 = vst [vmem:[%s469] sm:$0xf] %v473
        %v475 = vld [vmem:[%s469 + $0x4] sm:$0x1]
        %v476 = vsel %vm294, %v396, %v475
        %477 = vst [vmem:[%s469 + $0x4] sm:$0x1] %v476
        %v478 = vld [vmem:[%s469 + $0x8] sm:$0xf]
        %v479 = vsel %vm471, %v403, %v478
        %480 = vst [vmem:[%s469 + $0x8] sm:$0xf] %v479
        %v481 = vld [vmem:[%s469 + $0xc] sm:$0x1]
        %v482 = vsel %vm294, %v404, %v481
        %483 = vst [vmem:[%s469 + $0xc] sm:$0x1] %v482
        %v484 = vld [vmem:[%s469 + $0x10] sm:$0xf]
        %v485 = vsel %vm471, %v411, %v484
        %486 = vst [vmem:[%s469 + $0x10] sm:$0xf] %v485
        %v487 = vld [vmem:[%s469 + $0x14] sm:$0x1]
        %v488 = vsel %vm294, %v412, %v487
        %489 = vst [vmem:[%s469 + $0x14] sm:$0x1] %v488
        %v490 = vld [vmem:[%s469 + $0x18] sm:$0xf]
        %v491 = vsel %vm471, %v419, %v490
        %492 = vst [vmem:[%s469 + $0x18] sm:$0xf] %v491
        %v493 = vld [vmem:[%s469 + $0x1c] sm:$0x1]
        %v494 = vsel %vm294, %v420, %v493
        %495 = vst [vmem:[%s469 + $0x1c] sm:$0x1] %v494
        %v496 = vld [vmem:[%s469 + $0x20] sm:$0xf]
        %v497 = vsel %vm471, %v427, %v496
        %498 = vst [vmem:[%s469 + $0x20] sm:$0xf] %v497
        %v499 = vld [vmem:[%s469 + $0x24] sm:$0x1]
        %v500 = vsel %vm294, %v428, %v499
        %501 = vst [vmem:[%s469 + $0x24] sm:$0x1] %v500
        %v502 = vld [vmem:[%s469 + $0x28] sm:$0xf]
        %v503 = vsel %vm471, %v435, %v502
        %504 = vst [vmem:[%s469 + $0x28] sm:$0xf] %v503
        %v505 = vld [vmem:[%s469 + $0x2c] sm:$0x1]
        %v506 = vsel %vm294, %v436, %v505
        %507 = vst [vmem:[%s469 + $0x2c] sm:$0x1] %v506
        %v508 = vld [vmem:[%s469 + $0x30] sm:$0xf]
        %v509 = vsel %vm471, %v443, %v508
        %510 = vst [vmem:[%s469 + $0x30] sm:$0xf] %v509
        %v511 = vld [vmem:[%s469 + $0x34] sm:$0x1]
        %v512 = vsel %vm294, %v444, %v511
        %513 = vst [vmem:[%s469 + $0x34] sm:$0x1] %v512
        %v514 = vld [vmem:[%s469 + $0x38] sm:$0xf]
        %v515 = vsel %vm471, %v451, %v514
        %516 = vst [vmem:[%s469 + $0x38] sm:$0xf] %v515
        %v517 = vld [vmem:[%s469 + $0x3c] sm:$0x1]
        %v518 = vsel %vm294, %v452, %v517
        %519 = vst [vmem:[%s469 + $0x3c] sm:$0x1] %v518
        %v520 = vld [vmem:[#allocation2] sm:$0xf]
        %v521 = vld [vmem:[#allocation2 + $0x8] sm:$0xf]
        %v522 = vld [vmem:[#allocation2 + $0x10] sm:$0xf]
        %v523 = vld [vmem:[#allocation2 + $0x18] sm:$0xf]
        %v524 = vld [vmem:[#allocation2 + $0x20] sm:$0xf]
        %v525 = vld [vmem:[#allocation2 + $0x28] sm:$0xf]
        %v526 = vld [vmem:[#allocation2 + $0x30] sm:$0xf]
        %v527 = vld [vmem:[#allocation2 + $0x38] sm:$0xf]
        %v528 = vld [vmem:[%s1] sm:$0x3]
        %v529 = vld [vmem:[#allocation2 + $0x4] sm:$0x1]
        %v530 = vld [vmem:[#allocation2 + $0xc] sm:$0x1]
        %v531 = vld [vmem:[#allocation2 + $0x14] sm:$0x1]
        %v532 = vld [vmem:[#allocation2 + $0x1c] sm:$0x1]
        %v533 = vld [vmem:[#allocation2 + $0x24] sm:$0x1]
        %v534 = vld [vmem:[#allocation2 + $0x2c] sm:$0x1]
        %v535 = vld [vmem:[#allocation2 + $0x34] sm:$0x1]
        %v536 = vld [vmem:[#allocation2 + $0x3c] sm:$0x1]
        %vm537 = vsmask.f32 3328
        %vm538 = vsmask.f32 7440
        %vm539 = vmor %vm537, %vm538
        %v541 = vshrl.u32 %v520, 16
        %v543 = vrot.slane %v541, 4
        %v544 = vshll.u32 %v520, 16
        %v546 = vrot.slane %v544, 5
        %v547 = vor.u32 %v543, %v546
        %v548 = vrot.slane %v547, 4
        %v550 = vshll.u32 %v529, 16
        %v552 = vrot.slane %v550, 5
        %v553 = vsel %vm539, %v548, %v552
        %v555 = vshrl.u32 %v521, 16
        %v557 = vrot.slane %v555, 4
        %v558 = vshll.u32 %v521, 16
        %v560 = vrot.slane %v558, 5
        %v561 = vor.u32 %v557, %v560
        %v562 = vrot.slane %v561, 4
        %v564 = vshll.u32 %v530, 16
        %v566 = vrot.slane %v564, 5
        %v567 = vsel %vm539, %v562, %v566
        %v569 = vshrl.u32 %v522, 16
        %v571 = vrot.slane %v569, 4
        %v572 = vshll.u32 %v522, 16
        %v574 = vrot.slane %v572, 5
        %v575 = vor.u32 %v571, %v574
        %v576 = vrot.slane %v575, 4
        %v578 = vshll.u32 %v531, 16
        %v580 = vrot.slane %v578, 5
        %v581 = vsel %vm539, %v576, %v580
        %v583 = vshrl.u32 %v523, 16
        %v585 = vrot.slane %v583, 4
        %v586 = vshll.u32 %v523, 16
        %v588 = vrot.slane %v586, 5
        %v589 = vor.u32 %v585, %v588
        %v590 = vrot.slane %v589, 4
        %v592 = vshll.u32 %v532, 16
        %v594 = vrot.slane %v592, 5
        %v595 = vsel %vm539, %v590, %v594
        %v597 = vshrl.u32 %v524, 16
        %v599 = vrot.slane %v597, 4
        %v600 = vshll.u32 %v524, 16
        %v602 = vrot.slane %v600, 5
        %v603 = vor.u32 %v599, %v602
        %v604 = vrot.slane %v603, 4
        %v606 = vshll.u32 %v533, 16
        %v608 = vrot.slane %v606, 5
        %v609 = vsel %vm539, %v604, %v608
        %v611 = vshrl.u32 %v525, 16
        %v613 = vrot.slane %v611, 4
        %v614 = vshll.u32 %v525, 16
        %v616 = vrot.slane %v614, 5
        %v617 = vor.u32 %v613, %v616
        %v618 = vrot.slane %v617, 4
        %v620 = vshll.u32 %v534, 16
        %v622 = vrot.slane %v620, 5
        %v623 = vsel %vm539, %v618, %v622
        %v625 = vshrl.u32 %v526, 16
        %v627 = vrot.slane %v625, 4
        %v628 = vshll.u32 %v526, 16
        %v630 = vrot.slane %v628, 5
        %v631 = vor.u32 %v627, %v630
        %v632 = vrot.slane %v631, 4
        %v634 = vshll.u32 %v535, 16
        %v636 = vrot.slane %v634, 5
        %v637 = vsel %vm539, %v632, %v636
        %v639 = vshrl.u32 %v527, 16
        %v641 = vrot.slane %v639, 4
        %v642 = vshll.u32 %v527, 16
        %v644 = vrot.slane %v642, 5
        %v645 = vor.u32 %v641, %v644
        %v646 = vrot.slane %v645, 4
        %v648 = vshll.u32 %v536, 16
        %v650 = vrot.slane %v648, 5
        %v651 = vsel %vm539, %v646, %v650
        %s652 = scalar_lea.vmem %s1, 2
        %v653 = vld [vmem:[%s652] sm:$0x3]
        %v654 = vunpack.c.l.b16 %v553
        %v655 = vunpack.c.l.b16 %v567
        %v656 = vunpack.c.l.b16 %v581
        %v657 = vunpack.c.l.b16 %v595
        %v658 = vunpack.c.l.b16 %v609
        %v659 = vunpack.c.l.b16 %v623
        %v660 = vunpack.c.l.b16 %v637
        %v661 = vunpack.c.l.b16 %v651
        %v662 = vpack.c.b16 %v655, %v654
        %v663 = vpack.c.b16 %v657, %v656
        %v664 = vpack.c.b16 %v659, %v658
        %v665 = vpack.c.b16 %v661, %v660
        %vm666 = vcmask 31744
        %v668 = vsel %vm666, %v662, 0
        %v671 = vsel %vm666, %v663, 0
        %v674 = vsel %vm666, %v664, 0
        %v677 = vsel %vm666, %v665, 0
        %vm679 = vcmask 1041408
        %v681 = vsel %vm679, %v653, 0
        %683 = vmatprep.subr.bf16.mxu0 0
        %684 = vmatpush1.bf16.msra.mxu0 %v681
        %685 = vmatprep.subr.bf16.mxu0 0
        %686 = vmatpush1.bf16.msra.mxu0 0
        %687 = vmatprep.subr.bf16.mxu0 0
        %688 = vmatpush1.bf16.msra.mxu0 0
        %689 = vmatprep.subr.bf16.mxu0 0
        %690 = vmatpush1.bf16.msra.mxu0 0
        %691 = vmatprep.subr.bf16.mxu0 0
        %692 = vmatpush1.bf16.msra.mxu0 0
        %693 = vmatprep.subr.bf16.mxu0 0
        %694 = vmatpush1.bf16.msra.mxu0 0
        %695 = vmatprep.subr.bf16.mxu0 0
        %696 = vmatpush1.bf16.msra.mxu0 0
        %697 = vmatprep.subr.bf16.mxu0 0
        %698 = vmatpush1.bf16.msra.mxu0 0
        %699 = vmatprep.subr.bf16.mxu0 0
        %700 = vmatpush1.bf16.msra.mxu0 0
        %701 = vmatprep.subr.bf16.mxu0 0
        %702 = vmatpush1.bf16.msra.mxu0 0
        %703 = vmatprep.subr.bf16.mxu0 0
        %704 = vmatpush1.bf16.msra.mxu0 0
        %705 = vmatprep.subr.bf16.mxu0 0
        %706 = vmatpush1.bf16.msra.mxu0 0
        %707 = vmatprep.subr.bf16.mxu0 0
        %708 = vmatpush1.bf16.msra.mxu0 0
        %709 = vmatprep.subr.bf16.mxu0 0
        %710 = vmatpush1.bf16.msra.mxu0 0
        %711 = vmatprep.subr.bf16.mxu0 0
        %712 = vmatpush1.bf16.msra.mxu0 0
        %713 = vmatprep.subr.bf16.mxu0 0
        %714 = vmatpush1.bf16.msra.mxu0 0
        %715 = vmatprep.mubr.bf16.mxu0 0
        %716 = vmatmul.mubr.bf16.gmra.mrb[0].mxu0 %v668
        %v717 = vpop.f32.mrb[0].mxu0
        %v718 = vadd.f32 0.0, %v717
        %v719 = vpop.f32.mrb[0].mxu0
        %v720 = vpop.f32.mrb[0].mxu0
        %v721 = vadd.f32 0.0, %v720
        %v722 = vpop.f32.mrb[0].mxu0
        %723 = vmatprep.mubr.bf16.mxu0 0
        %724 = vmatmul.mubr.bf16.gmra.mrb[0].mxu0 %v671
        %v725 = vpop.f32.mrb[0].mxu0
        %v726 = vadd.f32 0.0, %v725
        %v727 = vpop.f32.mrb[0].mxu0
        %v728 = vpop.f32.mrb[0].mxu0
        %v729 = vadd.f32 0.0, %v728
        %v730 = vpop.f32.mrb[0].mxu0
        %731 = vmatprep.mubr.bf16.mxu0 0
        %732 = vmatmul.mubr.bf16.gmra.mrb[0].mxu0 %v674
        %v733 = vpop.f32.mrb[0].mxu0
        %v734 = vadd.f32 0.0, %v733
        %v735 = vpop.f32.mrb[0].mxu0
        %v736 = vpop.f32.mrb[0].mxu0
        %v737 = vadd.f32 0.0, %v736
        %v738 = vpop.f32.mrb[0].mxu0
        %739 = vmatprep.mubr.bf16.mxu0 0
        %740 = vmatmul.mubr.bf16.gmra.mrb[0].mxu0 %v677
        %v741 = vpop.f32.mrb[0].mxu0
        %v742 = vadd.f32 0.0, %v741
        %v743 = vpop.f32.mrb[0].mxu0
        %v744 = vpop.f32.mrb[0].mxu0
        %v745 = vadd.f32 0.0, %v744
        %v746 = vpop.f32.mrb[0].mxu0
        %747 = vdwg.mxu0
        %v756 = vunpack.c.l.b16 %v520
        %v757 = vunpack.c.l.b16 %v521
        %v758 = vunpack.c.l.b16 %v522
        %v759 = vunpack.c.l.b16 %v523
        %v760 = vunpack.c.l.b16 %v524
        %v761 = vunpack.c.l.b16 %v525
        %v762 = vunpack.c.l.b16 %v526
        %v763 = vunpack.c.l.b16 %v527
        %v764 = vpack.c.b16 %v757, %v756
        %v765 = vpack.c.b16 %v759, %v758
        %v766 = vpack.c.b16 %v761, %v760
        %v767 = vpack.c.b16 %v763, %v762
        %v769 = vsel %vm666, %v764, 0
        %v772 = vsel %vm666, %v765, 0
        %v775 = vsel %vm666, %v766, 0
        %v778 = vsel %vm666, %v767, 0
        %v781 = vsel %vm679, %v528, 0
        %783 = vmatprep.subr.bf16.mxu0 0
        %784 = vmatpush1.bf16.msra.mxu0 %v781
        %785 = vmatprep.subr.bf16.mxu0 0
        %786 = vmatpush1.bf16.msra.mxu0 0
        %787 = vmatprep.subr.bf16.mxu0 0
        %788 = vmatpush1.bf16.msra.mxu0 0
        %789 = vmatprep.subr.bf16.mxu0 0
        %790 = vmatpush1.bf16.msra.mxu0 0
        %791 = vmatprep.subr.bf16.mxu0 0
        %792 = vmatpush1.bf16.msra.mxu0 0
        %793 = vmatprep.subr.bf16.mxu0 0
        %794 = vmatpush1.bf16.msra.mxu0 0
        %795 = vmatprep.subr.bf16.mxu0 0
        %796 = vmatpush1.bf16.msra.mxu0 0
        %797 = vmatprep.subr.bf16.mxu0 0
        %798 = vmatpush1.bf16.msra.mxu0 0
        %799 = vmatprep.subr.bf16.mxu0 0
        %800 = vmatpush1.bf16.msra.mxu0 0
        %801 = vmatprep.subr.bf16.mxu0 0
        %802 = vmatpush1.bf16.msra.mxu0 0
        %803 = vmatprep.subr.bf16.mxu0 0
        %804 = vmatpush1.bf16.msra.mxu0 0
        %805 = vmatprep.subr.bf16.mxu0 0
        %806 = vmatpush1.bf16.msra.mxu0 0
        %807 = vmatprep.subr.bf16.mxu0 0
        %808 = vmatpush1.bf16.msra.mxu0 0
        %809 = vmatprep.subr.bf16.mxu0 0
        %810 = vmatpush1.bf16.msra.mxu0 0
        %811 = vmatprep.subr.bf16.mxu0 0
        %812 = vmatpush1.bf16.msra.mxu0 0
        %813 = vmatprep.subr.bf16.mxu0 0
        %814 = vmatpush1.bf16.msra.mxu0 0
        %815 = vmatprep.mubr.bf16.mxu0 0
        %816 = vmatmul.mubr.bf16.gmra.mrb[0].mxu0 %v769
        %v817 = vpop.f32.mrb[0].mxu0
        %v818 = vadd.f32 %v718, %v817
        %v819 = vpop.f32.mrb[0].mxu0
        %v820 = vpop.f32.mrb[0].mxu0
        %v821 = vadd.f32 %v721, %v820
        %v822 = vpop.f32.mrb[0].mxu0
        %823 = vmatprep.mubr.bf16.mxu0 0
        %824 = vmatmul.mubr.bf16.gmra.mrb[0].mxu0 %v772
        %v825 = vpop.f32.mrb[0].mxu0
        %v826 = vadd.f32 %v726, %v825
        %v827 = vpop.f32.mrb[0].mxu0
        %v828 = vpop.f32.mrb[0].mxu0
        %v829 = vadd.f32 %v729, %v828
        %v830 = vpop.f32.mrb[0].mxu0
        %831 = vmatprep.mubr.bf16.mxu0 0
        %832 = vmatmul.mubr.bf16.gmra.mrb[0].mxu0 %v775
        %v833 = vpop.f32.mrb[0].mxu0
        %v834 = vadd.f32 %v734, %v833
        %v835 = vpop.f32.mrb[0].mxu0
        %v836 = vpop.f32.mrb[0].mxu0
        %v837 = vadd.f32 %v737, %v836
        %v838 = vpop.f32.mrb[0].mxu0
        %839 = vmatprep.mubr.bf16.mxu0 0
        %840 = vmatmul.mubr.bf16.gmra.mrb[0].mxu0 %v778
        %v841 = vpop.f32.mrb[0].mxu0
        %v842 = vadd.f32 %v742, %v841
        %v843 = vpop.f32.mrb[0].mxu0
        %v844 = vpop.f32.mrb[0].mxu0
        %v845 = vadd.f32 %v745, %v844
        %v846 = vpop.f32.mrb[0].mxu0
        %847 = vdwg.mxu0
        %v848 = vld [vmem:[#allocation2] sm:$0xe]
        %v849 = vld [vmem:[#allocation2 + $0x8] sm:$0xe]
        %v850 = vld [vmem:[#allocation2 + $0x10] sm:$0xe]
        %v851 = vld [vmem:[#allocation2 + $0x18] sm:$0xe]
        %v852 = vld [vmem:[#allocation2 + $0x20] sm:$0xe]
        %v853 = vld [vmem:[#allocation2 + $0x28] sm:$0xe]
        %v854 = vld [vmem:[#allocation2 + $0x30] sm:$0xe]
        %v855 = vld [vmem:[#allocation2 + $0x38] sm:$0xe]
        %vm872 = vcmask 1042432
        %vm873 = vcmask 1046532
        %vm874 = vmor %vm872, %vm873
        %v875 = vrot.slane %v848, 5
        %v876 = vrot.slane %v875, 4
        %v877 = vrot.slane %v529, 5
        %v878 = vsel %vm874, %v876, %v877
        %v879 = vrot.slane %v849, 5
        %v880 = vrot.slane %v879, 4
        %v881 = vrot.slane %v530, 5
        %v882 = vsel %vm874, %v880, %v881
        %v883 = vrot.slane %v850, 5
        %v884 = vrot.slane %v883, 4
        %v885 = vrot.slane %v531, 5
        %v886 = vsel %vm874, %v884, %v885
        %v887 = vrot.slane %v851, 5
        %v888 = vrot.slane %v887, 4
        %v889 = vrot.slane %v532, 5
        %v890 = vsel %vm874, %v888, %v889
        %v891 = vrot.slane %v852, 5
        %v892 = vrot.slane %v891, 4
        %v893 = vrot.slane %v533, 5
        %v894 = vsel %vm874, %v892, %v893
        %v895 = vrot.slane %v853, 5
        %v896 = vrot.slane %v895, 4
        %v897 = vrot.slane %v534, 5
        %v898 = vsel %vm874, %v896, %v897
        %v899 = vrot.slane %v854, 5
        %v900 = vrot.slane %v899, 4
        %v901 = vrot.slane %v535, 5
        %v902 = vsel %vm874, %v900, %v901
        %v903 = vrot.slane %v855, 5
        %v904 = vrot.slane %v903, 4
        %v905 = vrot.slane %v536, 5
        %v906 = vsel %vm874, %v904, %v905
        %s907 = scalar_lea.vmem %s1, 4
        %v908 = vld [vmem:[%s907] sm:$0x3]
        %v909 = vunpack.c.l.b16 %v878
        %v910 = vunpack.c.l.b16 %v882
        %v911 = vunpack.c.l.b16 %v886
        %v912 = vunpack.c.l.b16 %v890
        %v913 = vunpack.c.l.b16 %v894
        %v914 = vunpack.c.l.b16 %v898
        %v915 = vunpack.c.l.b16 %v902
        %v916 = vunpack.c.l.b16 %v906
        %v917 = vpack.c.b16 %v910, %v909
        %v918 = vpack.c.b16 %v912, %v911
        %v919 = vpack.c.b16 %v914, %v913
        %v920 = vpack.c.b16 %v916, %v915
        %v922 = vsel %vm666, %v917, 0
        %v925 = vsel %vm666, %v918, 0
        %v928 = vsel %vm666, %v919, 0
        %v931 = vsel %vm666, %v920, 0
        %v934 = vsel %vm679, %v908, 0
        %936 = vmatprep.subr.bf16.mxu0 0
        %937 = vmatpush1.bf16.msra.mxu0 %v934
        %938 = vmatprep.subr.bf16.mxu0 0
        %939 = vmatpush1.bf16.msra.mxu0 0
        %940 = vmatprep.subr.bf16.mxu0 0
        %941 = vmatpush1.bf16.msra.mxu0 0
        %942 = vmatprep.subr.bf16.mxu0 0
        %943 = vmatpush1.bf16.msra.mxu0 0
        %944 = vmatprep.subr.bf16.mxu0 0
        %945 = vmatpush1.bf16.msra.mxu0 0
        %946 = vmatprep.subr.bf16.mxu0 0
        %947 = vmatpush1.bf16.msra.mxu0 0
        %948 = vmatprep.subr.bf16.mxu0 0
        %949 = vmatpush1.bf16.msra.mxu0 0
        %950 = vmatprep.subr.bf16.mxu0 0
        %951 = vmatpush1.bf16.msra.mxu0 0
        %952 = vmatprep.subr.bf16.mxu0 0
        %953 = vmatpush1.bf16.msra.mxu0 0
        %954 = vmatprep.subr.bf16.mxu0 0
        %955 = vmatpush1.bf16.msra.mxu0 0
        %956 = vmatprep.subr.bf16.mxu0 0
        %957 = vmatpush1.bf16.msra.mxu0 0
        %958 = vmatprep.subr.bf16.mxu0 0
        %959 = vmatpush1.bf16.msra.mxu0 0
        %960 = vmatprep.subr.bf16.mxu0 0
        %961 = vmatpush1.bf16.msra.mxu0 0
        %962 = vmatprep.subr.bf16.mxu0 0
        %963 = vmatpush1.bf16.msra.mxu0 0
        %964 = vmatprep.subr.bf16.mxu0 0
        %965 = vmatpush1.bf16.msra.mxu0 0
        %966 = vmatprep.subr.bf16.mxu0 0
        %967 = vmatpush1.bf16.msra.mxu0 0
        %968 = vmatprep.mubr.bf16.mxu0 0
        %969 = vmatmul.mubr.bf16.gmra.mrb[0].mxu0 %v922
        %v970 = vpop.f32.mrb[0].mxu0
        %v971 = vadd.f32 0.0, %v970
        %v972 = vpop.f32.mrb[0].mxu0
        %v973 = vpop.f32.mrb[0].mxu0
        %v974 = vadd.f32 0.0, %v973
        %v975 = vpop.f32.mrb[0].mxu0
        %976 = vmatprep.mubr.bf16.mxu0 0
        %977 = vmatmul.mubr.bf16.gmra.mrb[0].mxu0 %v925
        %v978 = vpop.f32.mrb[0].mxu0
        %v979 = vadd.f32 0.0, %v978
        %v980 = vpop.f32.mrb[0].mxu0
        %v981 = vpop.f32.mrb[0].mxu0
        %v982 = vadd.f32 0.0, %v981
        %v983 = vpop.f32.mrb[0].mxu0
        %984 = vmatprep.mubr.bf16.mxu0 0
        %985 = vmatmul.mubr.bf16.gmra.mrb[0].mxu0 %v928
        %v986 = vpop.f32.mrb[0].mxu0
        %v987 = vadd.f32 0.0, %v986
        %v988 = vpop.f32.mrb[0].mxu0
        %v989 = vpop.f32.mrb[0].mxu0
        %v990 = vadd.f32 0.0, %v989
        %v991 = vpop.f32.mrb[0].mxu0
        %992 = vmatprep.mubr.bf16.mxu0 0
        %993 = vmatmul.mubr.bf16.gmra.mrb[0].mxu0 %v931
        %v994 = vpop.f32.mrb[0].mxu0
        %v995 = vadd.f32 0.0, %v994
        %v996 = vpop.f32.mrb[0].mxu0
        %v997 = vpop.f32.mrb[0].mxu0
        %v998 = vadd.f32 0.0, %v997
        %v999 = vpop.f32.mrb[0].mxu0
        %1000 = vdwg.mxu0
        %v1001 = vadd.f32 %v818, %v971
        %v1002 = vadd.f32 %v821, %v974
        %v1003 = vadd.f32 %v826, %v979
        %v1004 = vadd.f32 %v829, %v982
        %v1005 = vadd.f32 %v834, %v987
        %v1006 = vadd.f32 %v837, %v990
        %v1007 = vadd.f32 %v842, %v995
        %v1008 = vadd.f32 %v845, %v998
        %v1009 = vld [vmem:[%s469] sm:$0xf]
        %v1010 = vld [vmem:[%s469 + $0x8] sm:$0xf]
        %v1011 = vld [vmem:[%s469 + $0x10] sm:$0xf]
        %v1012 = vld [vmem:[%s469 + $0x18] sm:$0xf]
        %v1013 = vld [vmem:[%s469 + $0x20] sm:$0xf]
        %v1014 = vld [vmem:[%s469 + $0x28] sm:$0xf]
        %v1015 = vld [vmem:[%s469 + $0x30] sm:$0xf]
        %v1016 = vld [vmem:[%s469 + $0x38] sm:$0xf]
        %s1017 = scalar_lea.vmem %s1, 6
        %v1018 = vld [vmem:[%s1017] sm:$0x3]
        %v1027 = vunpack.c.l.b16 %v1009
        %v1028 = vunpack.c.l.b16 %v1010
        %v1029 = vunpack.c.l.b16 %v1011
        %v1030 = vunpack.c.l.b16 %v1012
        %v1031 = vunpack.c.l.b16 %v1013
        %v1032 = vunpack.c.l.b16 %v1014
        %v1033 = vunpack.c.l.b16 %v1015
        %v1034 = vunpack.c.l.b16 %v1016
        %v1035 = vpack.c.b16 %v1028, %v1027
        %v1036 = vpack.c.b16 %v1030, %v1029
        %v1037 = vpack.c.b16 %v1032, %v1031
        %v1038 = vpack.c.b16 %v1034, %v1033
        %v1040 = vsel %vm666, %v1035, 0
        %v1043 = vsel %vm666, %v1036, 0
        %v1046 = vsel %vm666, %v1037, 0
        %v1049 = vsel %vm666, %v1038, 0
        %v1052 = vsel %vm679, %v1018, 0
        %1054 = vmatprep.subr.bf16.mxu0 0
        %1055 = vmatpush1.bf16.msra.mxu0 %v1052
        %1056 = vmatprep.subr.bf16.mxu0 0
        %1057 = vmatpush1.bf16.msra.mxu0 0
        %1058 = vmatprep.subr.bf16.mxu0 0
        %1059 = vmatpush1.bf16.msra.mxu0 0
        %1060 = vmatprep.subr.bf16.mxu0 0
        %1061 = vmatpush1.bf16.msra.mxu0 0
        %1062 = vmatprep.subr.bf16.mxu0 0
        %1063 = vmatpush1.bf16.msra.mxu0 0
        %1064 = vmatprep.subr.bf16.mxu0 0
        %1065 = vmatpush1.bf16.msra.mxu0 0
        %1066 = vmatprep.subr.bf16.mxu0 0
        %1067 = vmatpush1.bf16.msra.mxu0 0
        %1068 = vmatprep.subr.bf16.mxu0 0
        %1069 = vmatpush1.bf16.msra.mxu0 0
        %1070 = vmatprep.subr.bf16.mxu0 0
        %1071 = vmatpush1.bf16.msra.mxu0 0
        %1072 = vmatprep.subr.bf16.mxu0 0
        %1073 = vmatpush1.bf16.msra.mxu0 0
        %1074 = vmatprep.subr.bf16.mxu0 0
        %1075 = vmatpush1.bf16.msra.mxu0 0
        %1076 = vmatprep.subr.bf16.mxu0 0
        %1077 = vmatpush1.bf16.msra.mxu0 0
        %1078 = vmatprep.subr.bf16.mxu0 0
        %1079 = vmatpush1.bf16.msra.mxu0 0
        %1080 = vmatprep.subr.bf16.mxu0 0
        %1081 = vmatpush1.bf16.msra.mxu0 0
        %1082 = vmatprep.subr.bf16.mxu0 0
        %1083 = vmatpush1.bf16.msra.mxu0 0
        %1084 = vmatprep.subr.bf16.mxu0 0
        %1085 = vmatpush1.bf16.msra.mxu0 0
        %1086 = vmatprep.mubr.bf16.mxu0 0
        %1087 = vmatmul.mubr.bf16.gmra.mrb[0].mxu0 %v1040
        %v1088 = vpop.f32.mrb[0].mxu0
        %v1089 = vadd.f32 0.0, %v1088
        %v1090 = vpop.f32.mrb[0].mxu0
        %v1091 = vpop.f32.mrb[0].mxu0
        %v1092 = vadd.f32 0.0, %v1091
        %v1093 = vpop.f32.mrb[0].mxu0
        %1094 = vmatprep.mubr.bf16.mxu0 0
        %1095 = vmatmul.mubr.bf16.gmra.mrb[0].mxu0 %v1043
        %v1096 = vpop.f32.mrb[0].mxu0
        %v1097 = vadd.f32 0.0, %v1096
        %v1098 = vpop.f32.mrb[0].mxu0
        %v1099 = vpop.f32.mrb[0].mxu0
        %v1100 = vadd.f32 0.0, %v1099
        %v1101 = vpop.f32.mrb[0].mxu0
        %1102 = vmatprep.mubr.bf16.mxu0 0
        %1103 = vmatmul.mubr.bf16.gmra.mrb[0].mxu0 %v1046
        %v1104 = vpop.f32.mrb[0].mxu0
        %v1105 = vadd.f32 0.0, %v1104
        %v1106 = vpop.f32.mrb[0].mxu0
        %v1107 = vpop.f32.mrb[0].mxu0
        %v1108 = vadd.f32 0.0, %v1107
        %v1109 = vpop.f32.mrb[0].mxu0
        %1110 = vmatprep.mubr.bf16.mxu0 0
        %1111 = vmatmul.mubr.bf16.gmra.mrb[0].mxu0 %v1049
        %v1112 = vpop.f32.mrb[0].mxu0
        %v1113 = vadd.f32 0.0, %v1112
        %v1114 = vpop.f32.mrb[0].mxu0
        %v1115 = vpop.f32.mrb[0].mxu0
        %v1116 = vadd.f32 0.0, %v1115
        %v1117 = vpop.f32.mrb[0].mxu0
        %1118 = vdwg.mxu0
        %v1119 = vadd.f32 %v1001, %v1089
        %v1120 = vadd.f32 %v1002, %v1092
        %v1121 = vadd.f32 %v1003, %v1097
        %v1122 = vadd.f32 %v1004, %v1100
        %v1123 = vadd.f32 %v1005, %v1105
        %v1124 = vadd.f32 %v1006, %v1108
        %v1125 = vadd.f32 %v1007, %v1113
        %v1126 = vadd.f32 %v1008, %v1116
        %v1127 = vld [vmem:[%s469] sm:$0xf]
        %v1128 = vld [vmem:[%s469 + $0x4] sm:$0x1]
        %v1129 = vld [vmem:[%s469 + $0x8] sm:$0xf]
        %v1130 = vld [vmem:[%s469 + $0xc] sm:$0x1]
        %v1131 = vld [vmem:[%s469 + $0x10] sm:$0xf]
        %v1132 = vld [vmem:[%s469 + $0x14] sm:$0x1]
        %v1133 = vld [vmem:[%s469 + $0x18] sm:$0xf]
        %v1134 = vld [vmem:[%s469 + $0x1c] sm:$0x1]
        %v1135 = vld [vmem:[%s469 + $0x20] sm:$0xf]
        %v1136 = vld [vmem:[%s469 + $0x24] sm:$0x1]
        %v1137 = vld [vmem:[%s469 + $0x28] sm:$0xf]
        %v1138 = vld [vmem:[%s469 + $0x2c] sm:$0x1]
        %v1139 = vld [vmem:[%s469 + $0x30] sm:$0xf]
        %v1140 = vld [vmem:[%s469 + $0x34] sm:$0x1]
        %v1141 = vld [vmem:[%s469 + $0x38] sm:$0xf]
        %v1142 = vld [vmem:[%s469 + $0x3c] sm:$0x1]
        %v1144 = vshrl.u32 %v1127, 16
        %v1146 = vrot.slane %v1144, 4
        %v1147 = vshll.u32 %v1127, 16
        %v1149 = vrot.slane %v1147, 5
        %v1150 = vor.u32 %v1146, %v1149
        %v1151 = vrot.slane %v1150, 4
        %v1153 = vshll.u32 %v1128, 16
        %v1155 = vrot.slane %v1153, 5
        %v1156 = vsel %vm539, %v1151, %v1155
        %v1158 = vshrl.u32 %v1129, 16
        %v1160 = vrot.slane %v1158, 4
        %v1161 = vshll.u32 %v1129, 16
        %v1163 = vrot.slane %v1161, 5
        %v1164 = vor.u32 %v1160, %v1163
        %v1165 = vrot.slane %v1164, 4
        %v1167 = vshll.u32 %v1130, 16
        %v1169 = vrot.slane %v1167, 5
        %v1170 = vsel %vm539, %v1165, %v1169
        %v1172 = vshrl.u32 %v1131, 16
        %v1174 = vrot.slane %v1172, 4
        %v1175 = vshll.u32 %v1131, 16
        %v1177 = vrot.slane %v1175, 5
        %v1178 = vor.u32 %v1174, %v1177
        %v1179 = vrot.slane %v1178, 4
        %v1181 = vshll.u32 %v1132, 16
        %v1183 = vrot.slane %v1181, 5
        %v1184 = vsel %vm539, %v1179, %v1183
        %v1186 = vshrl.u32 %v1133, 16
        %v1188 = vrot.slane %v1186, 4
        %v1189 = vshll.u32 %v1133, 16
        %v1191 = vrot.slane %v1189, 5
        %v1192 = vor.u32 %v1188, %v1191
        %v1193 = vrot.slane %v1192, 4
        %v1195 = vshll.u32 %v1134, 16
        %v1197 = vrot.slane %v1195, 5
        %v1198 = vsel %vm539, %v1193, %v1197
        %v1200 = vshrl.u32 %v1135, 16
        %v1202 = vrot.slane %v1200, 4
        %v1203 = vshll.u32 %v1135, 16
        %v1205 = vrot.slane %v1203, 5
        %v1206 = vor.u32 %v1202, %v1205
        %v1207 = vrot.slane %v1206, 4
        %v1209 = vshll.u32 %v1136, 16
        %v1211 = vrot.slane %v1209, 5
        %v1212 = vsel %vm539, %v1207, %v1211
        %v1214 = vshrl.u32 %v1137, 16
        %v1216 = vrot.slane %v1214, 4
        %v1217 = vshll.u32 %v1137, 16
        %v1219 = vrot.slane %v1217, 5
        %v1220 = vor.u32 %v1216, %v1219
        %v1221 = vrot.slane %v1220, 4
        %v1223 = vshll.u32 %v1138, 16
        %v1225 = vrot.slane %v1223, 5
        %v1226 = vsel %vm539, %v1221, %v1225
        %v1228 = vshrl.u32 %v1139, 16
        %v1230 = vrot.slane %v1228, 4
        %v1231 = vshll.u32 %v1139, 16
        %v1233 = vrot.slane %v1231, 5
        %v1234 = vor.u32 %v1230, %v1233
        %v1235 = vrot.slane %v1234, 4
        %v1237 = vshll.u32 %v1140, 16
        %v1239 = vrot.slane %v1237, 5
        %v1240 = vsel %vm539, %v1235, %v1239
        %v1242 = vshrl.u32 %v1141, 16
        %v1244 = vrot.slane %v1242, 4
        %v1245 = vshll.u32 %v1141, 16
        %v1247 = vrot.slane %v1245, 5
        %v1248 = vor.u32 %v1244, %v1247
        %v1249 = vrot.slane %v1248, 4
        %v1251 = vshll.u32 %v1142, 16
        %v1253 = vrot.slane %v1251, 5
        %v1254 = vsel %vm539, %v1249, %v1253
        %s1255 = scalar_lea.vmem %s1, 8
        %v1256 = vld [vmem:[%s1255] sm:$0x3]
        %v1257 = vunpack.c.l.b16 %v1156
        %v1258 = vunpack.c.l.b16 %v1170
        %v1259 = vunpack.c.l.b16 %v1184
        %v1260 = vunpack.c.l.b16 %v1198
        %v1261 = vunpack.c.l.b16 %v1212
        %v1262 = vunpack.c.l.b16 %v1226
        %v1263 = vunpack.c.l.b16 %v1240
        %v1264 = vunpack.c.l.b16 %v1254
        %v1265 = vpack.c.b16 %v1258, %v1257
        %v1266 = vpack.c.b16 %v1260, %v1259
        %v1267 = vpack.c.b16 %v1262, %v1261
        %v1268 = vpack.c.b16 %v1264, %v1263
        %v1270 = vsel %vm666, %v1265, 0
        %v1273 = vsel %vm666, %v1266, 0
        %v1276 = vsel %vm666, %v1267, 0
        %v1279 = vsel %vm666, %v1268, 0
        %v1282 = vsel %vm679, %v1256, 0
        %1284 = vmatprep.subr.bf16.mxu0 0
        %1285 = vmatpush1.bf16.msra.mxu0 %v1282
        %1286 = vmatprep.subr.bf16.mxu0 0
        %1287 = vmatpush1.bf16.msra.mxu0 0
        %1288 = vmatprep.subr.bf16.mxu0 0
        %1289 = vmatpush1.bf16.msra.mxu0 0
        %1290 = vmatprep.subr.bf16.mxu0 0
        %1291 = vmatpush1.bf16.msra.mxu0 0
        %1292 = vmatprep.subr.bf16.mxu0 0
        %1293 = vmatpush1.bf16.msra.mxu0 0
        %1294 = vmatprep.subr.bf16.mxu0 0
        %1295 = vmatpush1.bf16.msra.mxu0 0
        %1296 = vmatprep.subr.bf16.mxu0 0
        %1297 = vmatpush1.bf16.msra.mxu0 0
        %1298 = vmatprep.subr.bf16.mxu0 0
        %1299 = vmatpush1.bf16.msra.mxu0 0
        %1300 = vmatprep.subr.bf16.mxu0 0
        %1301 = vmatpush1.bf16.msra.mxu0 0
        %1302 = vmatprep.subr.bf16.mxu0 0
        %1303 = vmatpush1.bf16.msra.mxu0 0
        %1304 = vmatprep.subr.bf16.mxu0 0
        %1305 = vmatpush1.bf16.msra.mxu0 0
        %1306 = vmatprep.subr.bf16.mxu0 0
        %1307 = vmatpush1.bf16.msra.mxu0 0
        %1308 = vmatprep.subr.bf16.mxu0 0
        %1309 = vmatpush1.bf16.msra.mxu0 0
        %1310 = vmatprep.subr.bf16.mxu0 0
        %1311 = vmatpush1.bf16.msra.mxu0 0
        %1312 = vmatprep.subr.bf16.mxu0 0
        %1313 = vmatpush1.bf16.msra.mxu0 0
        %1314 = vmatprep.subr.bf16.mxu0 0
        %1315 = vmatpush1.bf16.msra.mxu0 0
        %1316 = vmatprep.mubr.bf16.mxu0 0
        %1317 = vmatmul.mubr.bf16.gmra.mrb[0].mxu0 %v1270
        %v1318 = vpop.f32.mrb[0].mxu0
        %v1319 = vadd.f32 0.0, %v1318
        %v1320 = vpop.f32.mrb[0].mxu0
        %v1321 = vpop.f32.mrb[0].mxu0
        %v1322 = vadd.f32 0.0, %v1321
        %v1323 = vpop.f32.mrb[0].mxu0
        %1324 = vmatprep.mubr.bf16.mxu0 0
        %1325 = vmatmul.mubr.bf16.gmra.mrb[0].mxu0 %v1273
        %v1326 = vpop.f32.mrb[0].mxu0
        %v1327 = vadd.f32 0.0, %v1326
        %v1328 = vpop.f32.mrb[0].mxu0
        %v1329 = vpop.f32.mrb[0].mxu0
        %v1330 = vadd.f32 0.0, %v1329
        %v1331 = vpop.f32.mrb[0].mxu0
        %1332 = vmatprep.mubr.bf16.mxu0 0
        %1333 = vmatmul.mubr.bf16.gmra.mrb[0].mxu0 %v1276
        %v1334 = vpop.f32.mrb[0].mxu0
        %v1335 = vadd.f32 0.0, %v1334
        %v1336 = vpop.f32.mrb[0].mxu0
        %v1337 = vpop.f32.mrb[0].mxu0
        %v1338 = vadd.f32 0.0, %v1337
        %v1339 = vpop.f32.mrb[0].mxu0
        %1340 = vmatprep.mubr.bf16.mxu0 0
        %1341 = vmatmul.mubr.bf16.gmra.mrb[0].mxu0 %v1279
        %v1342 = vpop.f32.mrb[0].mxu0
        %v1343 = vadd.f32 0.0, %v1342
        %v1344 = vpop.f32.mrb[0].mxu0
        %v1345 = vpop.f32.mrb[0].mxu0
        %v1346 = vadd.f32 0.0, %v1345
        %v1347 = vpop.f32.mrb[0].mxu0
        %1348 = vdwg.mxu0
        %v1349 = vadd.f32 %v1119, %v1319
        %v1350 = vadd.f32 %v1120, %v1322
        %v1351 = vadd.f32 %v1121, %v1327
        %v1352 = vadd.f32 %v1122, %v1330
        %v1353 = vadd.f32 %v1123, %v1335
        %v1354 = vadd.f32 %v1124, %v1338
        %v1355 = vadd.f32 %v1125, %v1343
        %v1356 = vadd.f32 %v1126, %v1346
        %v1357 = vld [vmem:[%s469] sm:$0xe]
        %v1358 = vld [vmem:[%s469 + $0x8] sm:$0xe]
        %v1359 = vld [vmem:[%s469 + $0x10] sm:$0xe]
        %v1360 = vld [vmem:[%s469 + $0x18] sm:$0xe]
        %v1361 = vld [vmem:[%s469 + $0x20] sm:$0xe]
        %v1362 = vld [vmem:[%s469 + $0x28] sm:$0xe]
        %v1363 = vld [vmem:[%s469 + $0x30] sm:$0xe]
        %v1364 = vld [vmem:[%s469 + $0x38] sm:$0xe]
        %v1381 = vrot.slane %v1357, 5
        %v1382 = vrot.slane %v1381, 4
        %v1383 = vrot.slane %v1128, 5
        %v1384 = vsel %vm874, %v1382, %v1383
        %v1385 = vrot.slane %v1358, 5
        %v1386 = vrot.slane %v1385, 4
        %v1387 = vrot.slane %v1130, 5
        %v1388 = vsel %vm874, %v1386, %v1387
        %v1389 = vrot.slane %v1359, 5
        %v1390 = vrot.slane %v1389, 4
        %v1391 = vrot.slane %v1132, 5
        %v1392 = vsel %vm874, %v1390, %v1391
        %v1393 = vrot.slane %v1360, 5
        %v1394 = vrot.slane %v1393, 4
        %v1395 = vrot.slane %v1134, 5
        %v1396 = vsel %vm874, %v1394, %v1395
        %v1397 = vrot.slane %v1361, 5
        %v1398 = vrot.slane %v1397, 4
        %v1399 = vrot.slane %v1136, 5
        %v1400 = vsel %vm874, %v1398, %v1399
        %v1401 = vrot.slane %v1362, 5
        %v1402 = vrot.slane %v1401, 4
        %v1403 = vrot.slane %v1138, 5
        %v1404 = vsel %vm874, %v1402, %v1403
        %v1405 = vrot.slane %v1363, 5
        %v1406 = vrot.slane %v1405, 4
        %v1407 = vrot.slane %v1140, 5
        %v1408 = vsel %vm874, %v1406, %v1407
        %v1409 = vrot.slane %v1364, 5
        %v1410 = vrot.slane %v1409, 4
        %v1411 = vrot.slane %v1142, 5
        %v1412 = vsel %vm874, %v1410, %v1411
        %s1413 = scalar_lea.vmem %s1, 10
        %v1414 = vld [vmem:[%s1413] sm:$0x3]
        %v1415 = vunpack.c.l.b16 %v1384
        %v1416 = vunpack.c.l.b16 %v1388
        %v1417 = vunpack.c.l.b16 %v1392
        %v1418 = vunpack.c.l.b16 %v1396
        %v1419 = vunpack.c.l.b16 %v1400
        %v1420 = vunpack.c.l.b16 %v1404
        %v1421 = vunpack.c.l.b16 %v1408
        %v1422 = vunpack.c.l.b16 %v1412
        %v1423 = vpack.c.b16 %v1416, %v1415
        %v1424 = vpack.c.b16 %v1418, %v1417
        %v1425 = vpack.c.b16 %v1420, %v1419
        %v1426 = vpack.c.b16 %v1422, %v1421
        %v1428 = vsel %vm666, %v1423, 0
        %v1431 = vsel %vm666, %v1424, 0
        %v1434 = vsel %vm666, %v1425, 0
        %v1437 = vsel %vm666, %v1426, 0
        %v1440 = vsel %vm679, %v1414, 0
        %1442 = vmatprep.subr.bf16.mxu0 0
        %1443 = vmatpush1.bf16.msra.mxu0 %v1440
        %1444 = vmatprep.subr.bf16.mxu0 0
        %1445 = vmatpush1.bf16.msra.mxu0 0
        %1446 = vmatprep.subr.bf16.mxu0 0
        %1447 = vmatpush1.bf16.msra.mxu0 0
        %1448 = vmatprep.subr.bf16.mxu0 0
        %1449 = vmatpush1.bf16.msra.mxu0 0
        %1450 = vmatprep.subr.bf16.mxu0 0
        %1451 = vmatpush1.bf16.msra.mxu0 0
        %1452 = vmatprep.subr.bf16.mxu0 0
        %1453 = vmatpush1.bf16.msra.mxu0 0
        %1454 = vmatprep.subr.bf16.mxu0 0
        %1455 = vmatpush1.bf16.msra.mxu0 0
        %1456 = vmatprep.subr.bf16.mxu0 0
        %1457 = vmatpush1.bf16.msra.mxu0 0
        %1458 = vmatprep.subr.bf16.mxu0 0
        %1459 = vmatpush1.bf16.msra.mxu0 0
        %1460 = vmatprep.subr.bf16.mxu0 0
        %1461 = vmatpush1.bf16.msra.mxu0 0
        %1462 = vmatprep.subr.bf16.mxu0 0
        %1463 = vmatpush1.bf16.msra.mxu0 0
        %1464 = vmatprep.subr.bf16.mxu0 0
        %1465 = vmatpush1.bf16.msra.mxu0 0
        %1466 = vmatprep.subr.bf16.mxu0 0
        %1467 = vmatpush1.bf16.msra.mxu0 0
        %1468 = vmatprep.subr.bf16.mxu0 0
        %1469 = vmatpush1.bf16.msra.mxu0 0
        %1470 = vmatprep.subr.bf16.mxu0 0
        %1471 = vmatpush1.bf16.msra.mxu0 0
        %1472 = vmatprep.subr.bf16.mxu0 0
        %1473 = vmatpush1.bf16.msra.mxu0 0
        %1474 = vmatprep.mubr.bf16.mxu0 0
        %1475 = vmatmul.mubr.bf16.gmra.mrb[0].mxu0 %v1428
        %v1476 = vpop.f32.mrb[0].mxu0
        %v1477 = vadd.f32 0.0, %v1476
        %v1478 = vpop.f32.mrb[0].mxu0
        %v1479 = vpop.f32.mrb[0].mxu0
        %v1480 = vadd.f32 0.0, %v1479
        %v1481 = vpop.f32.mrb[0].mxu0
        %1482 = vmatprep.mubr.bf16.mxu0 0
        %1483 = vmatmul.mubr.bf16.gmra.mrb[0].mxu0 %v1431
        %v1484 = vpop.f32.mrb[0].mxu0
        %v1485 = vadd.f32 0.0, %v1484
        %v1486 = vpop.f32.mrb[0].mxu0
        %v1487 = vpop.f32.mrb[0].mxu0
        %v1488 = vadd.f32 0.0, %v1487
        %v1489 = vpop.f32.mrb[0].mxu0
        %1490 = vmatprep.mubr.bf16.mxu0 0
        %1491 = vmatmul.mubr.bf16.gmra.mrb[0].mxu0 %v1434
        %v1492 = vpop.f32.mrb[0].mxu0
        %v1493 = vadd.f32 0.0, %v1492
        %v1494 = vpop.f32.mrb[0].mxu0
        %v1495 = vpop.f32.mrb[0].mxu0
        %v1496 = vadd.f32 0.0, %v1495
        %v1497 = vpop.f32.mrb[0].mxu0
        %1498 = vmatprep.mubr.bf16.mxu0 0
        %1499 = vmatmul.mubr.bf16.gmra.mrb[0].mxu0 %v1437
        %v1500 = vpop.f32.mrb[0].mxu0
        %v1501 = vadd.f32 0.0, %v1500
        %v1502 = vpop.f32.mrb[0].mxu0
        %v1503 = vpop.f32.mrb[0].mxu0
        %v1504 = vadd.f32 0.0, %v1503
        %v1505 = vpop.f32.mrb[0].mxu0
        %1506 = vdwg.mxu0
        %v1507 = vadd.f32 %v1349, %v1477
        %v1508 = vadd.f32 %v1350, %v1480
        %v1509 = vadd.f32 %v1351, %v1485
        %v1510 = vadd.f32 %v1352, %v1488
        %v1511 = vadd.f32 %v1353, %v1493
        %v1512 = vadd.f32 %v1354, %v1496
        %v1513 = vadd.f32 %v1355, %v1501
        %v1514 = vadd.f32 %v1356, %v1504
        %s1515 = scalar_lea.vmem [#allocation2], 16
        %v1516 = vld [vmem:[%s1515] sm:$0xf]
        %v1517 = vld [vmem:[%s1515 + $0x8] sm:$0xf]
        %v1518 = vld [vmem:[%s1515 + $0x10] sm:$0xf]
        %v1519 = vld [vmem:[%s1515 + $0x18] sm:$0xf]
        %v1520 = vld [vmem:[%s1515 + $0x20] sm:$0xf]
        %v1521 = vld [vmem:[%s1515 + $0x28] sm:$0xf]
        %v1522 = vld [vmem:[%s1515 + $0x30] sm:$0xf]
        %v1523 = vld [vmem:[%s1515 + $0x38] sm:$0xf]
        %s1524 = scalar_lea.vmem %s1, 12
        %v1525 = vld [vmem:[%s1524] sm:$0x3]
        %v1534 = vunpack.c.l.b16 %v1516
        %v1535 = vunpack.c.l.b16 %v1517
        %v1536 = vunpack.c.l.b16 %v1518
        %v1537 = vunpack.c.l.b16 %v1519
        %v1538 = vunpack.c.l.b16 %v1520
        %v1539 = vunpack.c.l.b16 %v1521
        %v1540 = vunpack.c.l.b16 %v1522
        %v1541 = vunpack.c.l.b16 %v1523
        %v1542 = vpack.c.b16 %v1535, %v1534
        %v1543 = vpack.c.b16 %v1537, %v1536
        %v1544 = vpack.c.b16 %v1539, %v1538
        %v1545 = vpack.c.b16 %v1541, %v1540
        %v1547 = vsel %vm666, %v1542, 0
        %v1550 = vsel %vm666, %v1543, 0
        %v1553 = vsel %vm666, %v1544, 0
        %v1556 = vsel %vm666, %v1545, 0
        %v1559 = vsel %vm679, %v1525, 0
        %1561 = vmatprep.subr.bf16.mxu0 0
        %1562 = vmatpush1.bf16.msra.mxu0 %v1559
        %1563 = vmatprep.subr.bf16.mxu0 0
        %1564 = vmatpush1.bf16.msra.mxu0 0
        %1565 = vmatprep.subr.bf16.mxu0 0
        %1566 = vmatpush1.bf16.msra.mxu0 0
        %1567 = vmatprep.subr.bf16.mxu0 0
        %1568 = vmatpush1.bf16.msra.mxu0 0
        %1569 = vmatprep.subr.bf16.mxu0 0
        %1570 = vmatpush1.bf16.msra.mxu0 0
        %1571 = vmatprep.subr.bf16.mxu0 0
        %1572 = vmatpush1.bf16.msra.mxu0 0
        %1573 = vmatprep.subr.bf16.mxu0 0
        %1574 = vmatpush1.bf16.msra.mxu0 0
        %1575 = vmatprep.subr.bf16.mxu0 0
        %1576 = vmatpush1.bf16.msra.mxu0 0
        %1577 = vmatprep.subr.bf16.mxu0 0
        %1578 = vmatpush1.bf16.msra.mxu0 0
        %1579 = vmatprep.subr.bf16.mxu0 0
        %1580 = vmatpush1.bf16.msra.mxu0 0
        %1581 = vmatprep.subr.bf16.mxu0 0
        %1582 = vmatpush1.bf16.msra.mxu0 0
        %1583 = vmatprep.subr.bf16.mxu0 0
        %1584 = vmatpush1.bf16.msra.mxu0 0
        %1585 = vmatprep.subr.bf16.mxu0 0
        %1586 = vmatpush1.bf16.msra.mxu0 0
        %1587 = vmatprep.subr.bf16.mxu0 0
        %1588 = vmatpush1.bf16.msra.mxu0 0
        %1589 = vmatprep.subr.bf16.mxu0 0
        %1590 = vmatpush1.bf16.msra.mxu0 0
        %1591 = vmatprep.subr.bf16.mxu0 0
        %1592 = vmatpush1.bf16.msra.mxu0 0
        %1593 = vmatprep.mubr.bf16.mxu0 0
        %1594 = vmatmul.mubr.bf16.gmra.mrb[0].mxu0 %v1547
        %v1595 = vpop.f32.mrb[0].mxu0
        %v1596 = vadd.f32 0.0, %v1595
        %v1597 = vpop.f32.mrb[0].mxu0
        %v1598 = vpop.f32.mrb[0].mxu0
        %v1599 = vadd.f32 0.0, %v1598
        %v1600 = vpop.f32.mrb[0].mxu0
        %1601 = vmatprep.mubr.bf16.mxu0 0
        %1602 = vmatmul.mubr.bf16.gmra.mrb[0].mxu0 %v1550
        %v1603 = vpop.f32.mrb[0].mxu0
        %v1604 = vadd.f32 0.0, %v1603
        %v1605 = vpop.f32.mrb[0].mxu0
        %v1606 = vpop.f32.mrb[0].mxu0
        %v1607 = vadd.f32 0.0, %v1606
        %v1608 = vpop.f32.mrb[0].mxu0
        %1609 = vmatprep.mubr.bf16.mxu0 0
        %1610 = vmatmul.mubr.bf16.gmra.mrb[0].mxu0 %v1553
        %v1611 = vpop.f32.mrb[0].mxu0
        %v1612 = vadd.f32 0.0, %v1611
        %v1613 = vpop.f32.mrb[0].mxu0
        %v1614 = vpop.f32.mrb[0].mxu0
        %v1615 = vadd.f32 0.0, %v1614
        %v1616 = vpop.f32.mrb[0].mxu0
        %1617 = vmatprep.mubr.bf16.mxu0 0
        %1618 = vmatmul.mubr.bf16.gmra.mrb[0].mxu0 %v1556
        %v1619 = vpop.f32.mrb[0].mxu0
        %v1620 = vadd.f32 0.0, %v1619
        %v1621 = vpop.f32.mrb[0].mxu0
        %v1622 = vpop.f32.mrb[0].mxu0
        %v1623 = vadd.f32 0.0, %v1622
        %v1624 = vpop.f32.mrb[0].mxu0
        %1625 = vdwg.mxu0
        %v1626 = vadd.f32 %v1507, %v1596
        %v1627 = vadd.f32 %v1508, %v1599
        %v1628 = vadd.f32 %v1509, %v1604
        %v1629 = vadd.f32 %v1510, %v1607
        %v1630 = vadd.f32 %v1511, %v1612
        %v1631 = vadd.f32 %v1512, %v1615
        %v1632 = vadd.f32 %v1513, %v1620
        %v1633 = vadd.f32 %v1514, %v1623
        %v1634 = vld [vmem:[%s1515] sm:$0xf]
        %v1635 = vld [vmem:[%s1515 + $0x4] sm:$0x1]
        %v1636 = vld [vmem:[%s1515 + $0x8] sm:$0xf]
        %v1637 = vld [vmem:[%s1515 + $0xc] sm:$0x1]
        %v1638 = vld [vmem:[%s1515 + $0x10] sm:$0xf]
        %v1639 = vld [vmem:[%s1515 + $0x14] sm:$0x1]
        %v1640 = vld [vmem:[%s1515 + $0x18] sm:$0xf]
        %v1641 = vld [vmem:[%s1515 + $0x1c] sm:$0x1]
        %v1642 = vld [vmem:[%s1515 + $0x20] sm:$0xf]
        %v1643 = vld [vmem:[%s1515 + $0x24] sm:$0x1]
        %v1644 = vld [vmem:[%s1515 + $0x28] sm:$0xf]
        %v1645 = vld [vmem:[%s1515 + $0x2c] sm:$0x1]
        %v1646 = vld [vmem:[%s1515 + $0x30] sm:$0xf]
        %v1647 = vld [vmem:[%s1515 + $0x34] sm:$0x1]
        %v1648 = vld [vmem:[%s1515 + $0x38] sm:$0xf]
        %v1649 = vld [vmem:[%s1515 + $0x3c] sm:$0x1]
        %v1651 = vshrl.u32 %v1634, 16
        %v1653 = vrot.slane %v1651, 4
        %v1654 = vshll.u32 %v1634, 16
        %v1656 = vrot.slane %v1654, 5
        %v1657 = vor.u32 %v1653, %v1656
        %v1658 = vrot.slane %v1657, 4
        %v1660 = vshll.u32 %v1635, 16
        %v1662 = vrot.slane %v1660, 5
        %v1663 = vsel %vm539, %v1658, %v1662
        %v1665 = vshrl.u32 %v1636, 16
        %v1667 = vrot.slane %v1665, 4
        %v1668 = vshll.u32 %v1636, 16
        %v1670 = vrot.slane %v1668, 5
        %v1671 = vor.u32 %v1667, %v1670
        %v1672 = vrot.slane %v1671, 4
        %v1674 = vshll.u32 %v1637, 16
        %v1676 = vrot.slane %v1674, 5
        %v1677 = vsel %vm539, %v1672, %v1676
        %v1679 = vshrl.u32 %v1638, 16
        %v1681 = vrot.slane %v1679, 4
        %v1682 = vshll.u32 %v1638, 16
        %v1684 = vrot.slane %v1682, 5
        %v1685 = vor.u32 %v1681, %v1684
        %v1686 = vrot.slane %v1685, 4
        %v1688 = vshll.u32 %v1639, 16
        %v1690 = vrot.slane %v1688, 5
        %v1691 = vsel %vm539, %v1686, %v1690
        %v1693 = vshrl.u32 %v1640, 16
        %v1695 = vrot.slane %v1693, 4
        %v1696 = vshll.u32 %v1640, 16
        %v1698 = vrot.slane %v1696, 5
        %v1699 = vor.u32 %v1695, %v1698
        %v1700 = vrot.slane %v1699, 4
        %v1702 = vshll.u32 %v1641, 16
        %v1704 = vrot.slane %v1702, 5
        %v1705 = vsel %vm539, %v1700, %v1704
        %v1707 = vshrl.u32 %v1642, 16
        %v1709 = vrot.slane %v1707, 4
        %v1710 = vshll.u32 %v1642, 16
        %v1712 = vrot.slane %v1710, 5
        %v1713 = vor.u32 %v1709, %v1712
        %v1714 = vrot.slane %v1713, 4
        %v1716 = vshll.u32 %v1643, 16
        %v1718 = vrot.slane %v1716, 5
        %v1719 = vsel %vm539, %v1714, %v1718
        %v1721 = vshrl.u32 %v1644, 16
        %v1723 = vrot.slane %v1721, 4
        %v1724 = vshll.u32 %v1644, 16
        %v1726 = vrot.slane %v1724, 5
        %v1727 = vor.u32 %v1723, %v1726
        %v1728 = vrot.slane %v1727, 4
        %v1730 = vshll.u32 %v1645, 16
        %v1732 = vrot.slane %v1730, 5
        %v1733 = vsel %vm539, %v1728, %v1732
        %v1735 = vshrl.u32 %v1646, 16
        %v1737 = vrot.slane %v1735, 4
        %v1738 = vshll.u32 %v1646, 16
        %v1740 = vrot.slane %v1738, 5
        %v1741 = vor.u32 %v1737, %v1740
        %v1742 = vrot.slane %v1741, 4
        %v1744 = vshll.u32 %v1647, 16
        %v1746 = vrot.slane %v1744, 5
        %v1747 = vsel %vm539, %v1742, %v1746
        %v1749 = vshrl.u32 %v1648, 16
        %v1751 = vrot.slane %v1749, 4
        %v1752 = vshll.u32 %v1648, 16
        %v1754 = vrot.slane %v1752, 5
        %v1755 = vor.u32 %v1751, %v1754
        %v1756 = vrot.slane %v1755, 4
        %v1758 = vshll.u32 %v1649, 16
        %v1760 = vrot.slane %v1758, 5
        %v1761 = vsel %vm539, %v1756, %v1760
        %s1762 = scalar_lea.vmem %s1, 14
        %v1763 = vld [vmem:[%s1762] sm:$0x3]
        %v1764 = vunpack.c.l.b16 %v1663
        %v1765 = vunpack.c.l.b16 %v1677
        %v1766 = vunpack.c.l.b16 %v1691
        %v1767 = vunpack.c.l.b16 %v1705
        %v1768 = vunpack.c.l.b16 %v1719
        %v1769 = vunpack.c.l.b16 %v1733
        %v1770 = vunpack.c.l.b16 %v1747
        %v1771 = vunpack.c.l.b16 %v1761
        %v1772 = vpack.c.b16 %v1765, %v1764
        %v1773 = vpack.c.b16 %v1767, %v1766
        %v1774 = vpack.c.b16 %v1769, %v1768
        %v1775 = vpack.c.b16 %v1771, %v1770
        %v1777 = vsel %vm666, %v1772, 0
        %v1780 = vsel %vm666, %v1773, 0
        %v1783 = vsel %vm666, %v1774, 0
        %v1786 = vsel %vm666, %v1775, 0
        %v1789 = vsel %vm679, %v1763, 0
        %1791 = vmatprep.subr.bf16.mxu0 0
        %1792 = vmatpush1.bf16.msra.mxu0 %v1789
        %1793 = vmatprep.subr.bf16.mxu0 0
        %1794 = vmatpush1.bf16.msra.mxu0 0
        %1795 = vmatprep.subr.bf16.mxu0 0
        %1796 = vmatpush1.bf16.msra.mxu0 0
        %1797 = vmatprep.subr.bf16.mxu0 0
        %1798 = vmatpush1.bf16.msra.mxu0 0
        %1799 = vmatprep.subr.bf16.mxu0 0
        %1800 = vmatpush1.bf16.msra.mxu0 0
        %1801 = vmatprep.subr.bf16.mxu0 0
        %1802 = vmatpush1.bf16.msra.mxu0 0
        %1803 = vmatprep.subr.bf16.mxu0 0
        %1804 = vmatpush1.bf16.msra.mxu0 0
        %1805 = vmatprep.subr.bf16.mxu0 0
        %1806 = vmatpush1.bf16.msra.mxu0 0
        %1807 = vmatprep.subr.bf16.mxu0 0
        %1808 = vmatpush1.bf16.msra.mxu0 0
        %1809 = vmatprep.subr.bf16.mxu0 0
        %1810 = vmatpush1.bf16.msra.mxu0 0
        %1811 = vmatprep.subr.bf16.mxu0 0
        %1812 = vmatpush1.bf16.msra.mxu0 0
        %1813 = vmatprep.subr.bf16.mxu0 0
        %1814 = vmatpush1.bf16.msra.mxu0 0
        %1815 = vmatprep.subr.bf16.mxu0 0
        %1816 = vmatpush1.bf16.msra.mxu0 0
        %1817 = vmatprep.subr.bf16.mxu0 0
        %1818 = vmatpush1.bf16.msra.mxu0 0
        %1819 = vmatprep.subr.bf16.mxu0 0
        %1820 = vmatpush1.bf16.msra.mxu0 0
        %1821 = vmatprep.subr.bf16.mxu0 0
        %1822 = vmatpush1.bf16.msra.mxu0 0
        %1823 = vmatprep.mubr.bf16.mxu0 0
        %1824 = vmatmul.mubr.bf16.gmra.mrb[0].mxu0 %v1777
        %v1825 = vpop.f32.mrb[0].mxu0
        %v1826 = vadd.f32 0.0, %v1825
        %v1827 = vpop.f32.mrb[0].mxu0
        %v1828 = vpop.f32.mrb[0].mxu0
        %v1829 = vadd.f32 0.0, %v1828
        %v1830 = vpop.f32.mrb[0].mxu0
        %1831 = vmatprep.mubr.bf16.mxu0 0
        %1832 = vmatmul.mubr.bf16.gmra.mrb[0].mxu0 %v1780
        %v1833 = vpop.f32.mrb[0].mxu0
        %v1834 = vadd.f32 0.0, %v1833
        %v1835 = vpop.f32.mrb[0].mxu0
        %v1836 = vpop.f32.mrb[0].mxu0
        %v1837 = vadd.f32 0.0, %v1836
        %v1838 = vpop.f32.mrb[0].mxu0
        %1839 = vmatprep.mubr.bf16.mxu0 0
        %1840 = vmatmul.mubr.bf16.gmra.mrb[0].mxu0 %v1783
        %v1841 = vpop.f32.mrb[0].mxu0
        %v1842 = vadd.f32 0.0, %v1841
        %v1843 = vpop.f32.mrb[0].mxu0
        %v1844 = vpop.f32.mrb[0].mxu0
        %v1845 = vadd.f32 0.0, %v1844
        %v1846 = vpop.f32.mrb[0].mxu0
        %1847 = vmatprep.mubr.bf16.mxu0 0
        %1848 = vmatmul.mubr.bf16.gmra.mrb[0].mxu0 %v1786
        %v1849 = vpop.f32.mrb[0].mxu0
        %v1850 = vadd.f32 0.0, %v1849
        %v1851 = vpop.f32.mrb[0].mxu0
        %v1852 = vpop.f32.mrb[0].mxu0
        %v1853 = vadd.f32 0.0, %v1852
        %v1854 = vpop.f32.mrb[0].mxu0
        %1855 = vdwg.mxu0
        %v1856 = vadd.f32 %v1626, %v1826
        %v1857 = vadd.f32 %v1627, %v1829
        %v1858 = vadd.f32 %v1628, %v1834
        %v1859 = vadd.f32 %v1629, %v1837
        %v1860 = vadd.f32 %v1630, %v1842
        %v1861 = vadd.f32 %v1631, %v1845
        %v1862 = vadd.f32 %v1632, %v1850
        %v1863 = vadd.f32 %v1633, %v1853
        %v1864 = vld [vmem:[%s1515] sm:$0xe]
        %v1865 = vld [vmem:[%s1515 + $0x8] sm:$0xe]
        %v1866 = vld [vmem:[%s1515 + $0x10] sm:$0xe]
        %v1867 = vld [vmem:[%s1515 + $0x18] sm:$0xe]
        %v1868 = vld [vmem:[%s1515 + $0x20] sm:$0xe]
        %v1869 = vld [vmem:[%s1515 + $0x28] sm:$0xe]
        %v1870 = vld [vmem:[%s1515 + $0x30] sm:$0xe]
        %v1871 = vld [vmem:[%s1515 + $0x38] sm:$0xe]
        %v1888 = vrot.slane %v1864, 5
        %v1889 = vrot.slane %v1888, 4
        %v1890 = vrot.slane %v1635, 5
        %v1891 = vsel %vm874, %v1889, %v1890
        %v1892 = vrot.slane %v1865, 5
        %v1893 = vrot.slane %v1892, 4
        %v1894 = vrot.slane %v1637, 5
        %v1895 = vsel %vm874, %v1893, %v1894
        %v1896 = vrot.slane %v1866, 5
        %v1897 = vrot.slane %v1896, 4
        %v1898 = vrot.slane %v1639, 5
        %v1899 = vsel %vm874, %v1897, %v1898
        %v1900 = vrot.slane %v1867, 5
        %v1901 = vrot.slane %v1900, 4
        %v1902 = vrot.slane %v1641, 5
        %v1903 = vsel %vm874, %v1901, %v1902
        %v1904 = vrot.slane %v1868, 5
        %v1905 = vrot.slane %v1904, 4
        %v1906 = vrot.slane %v1643, 5
        %v1907 = vsel %vm874, %v1905, %v1906
        %v1908 = vrot.slane %v1869, 5
        %v1909 = vrot.slane %v1908, 4
        %v1910 = vrot.slane %v1645, 5
        %v1911 = vsel %vm874, %v1909, %v1910
        %v1912 = vrot.slane %v1870, 5
        %v1913 = vrot.slane %v1912, 4
        %v1914 = vrot.slane %v1647, 5
        %v1915 = vsel %vm874, %v1913, %v1914
        %v1916 = vrot.slane %v1871, 5
        %v1917 = vrot.slane %v1916, 4
        %v1918 = vrot.slane %v1649, 5
        %v1919 = vsel %vm874, %v1917, %v1918
        %s1920 = scalar_lea.vmem %s1, 16
        %v1921 = vld [vmem:[%s1920] sm:$0x3]
        %v1922 = vunpack.c.l.b16 %v1891
        %v1923 = vunpack.c.l.b16 %v1895
        %v1924 = vunpack.c.l.b16 %v1899
        %v1925 = vunpack.c.l.b16 %v1903
        %v1926 = vunpack.c.l.b16 %v1907
        %v1927 = vunpack.c.l.b16 %v1911
        %v1928 = vunpack.c.l.b16 %v1915
        %v1929 = vunpack.c.l.b16 %v1919
        %v1930 = vpack.c.b16 %v1923, %v1922
        %v1931 = vpack.c.b16 %v1925, %v1924
        %v1932 = vpack.c.b16 %v1927, %v1926
        %v1933 = vpack.c.b16 %v1929, %v1928
        %v1935 = vsel %vm666, %v1930, 0
        %v1938 = vsel %vm666, %v1931, 0
        %v1941 = vsel %vm666, %v1932, 0
        %v1944 = vsel %vm666, %v1933, 0
        %v1947 = vsel %vm679, %v1921, 0
        %1949 = vmatprep.subr.bf16.mxu0 0
        %1950 = vmatpush1.bf16.msra.mxu0 %v1947
        %1951 = vmatprep.subr.bf16.mxu0 0
        %1952 = vmatpush1.bf16.msra.mxu0 0
        %1953 = vmatprep.subr.bf16.mxu0 0
        %1954 = vmatpush1.bf16.msra.mxu0 0
        %1955 = vmatprep.subr.bf16.mxu0 0
        %1956 = vmatpush1.bf16.msra.mxu0 0
        %1957 = vmatprep.subr.bf16.mxu0 0
        %1958 = vmatpush1.bf16.msra.mxu0 0
        %1959 = vmatprep.subr.bf16.mxu0 0
        %1960 = vmatpush1.bf16.msra.mxu0 0
        %1961 = vmatprep.subr.bf16.mxu0 0
        %1962 = vmatpush1.bf16.msra.mxu0 0
        %1963 = vmatprep.subr.bf16.mxu0 0
        %1964 = vmatpush1.bf16.msra.mxu0 0
        %1965 = vmatprep.subr.bf16.mxu0 0
        %1966 = vmatpush1.bf16.msra.mxu0 0
        %1967 = vmatprep.subr.bf16.mxu0 0
        %1968 = vmatpush1.bf16.msra.mxu0 0
        %1969 = vmatprep.subr.bf16.mxu0 0
        %1970 = vmatpush1.bf16.msra.mxu0 0
        %1971 = vmatprep.subr.bf16.mxu0 0
        %1972 = vmatpush1.bf16.msra.mxu0 0
        %1973 = vmatprep.subr.bf16.mxu0 0
        %1974 = vmatpush1.bf16.msra.mxu0 0
        %1975 = vmatprep.subr.bf16.mxu0 0
        %1976 = vmatpush1.bf16.msra.mxu0 0
        %1977 = vmatprep.subr.bf16.mxu0 0
        %1978 = vmatpush1.bf16.msra.mxu0 0
        %1979 = vmatprep.subr.bf16.mxu0 0
        %1980 = vmatpush1.bf16.msra.mxu0 0
        %1981 = vmatprep.mubr.bf16.mxu0 0
        %1982 = vmatmul.mubr.bf16.gmra.mrb[0].mxu0 %v1935
        %v1983 = vpop.f32.mrb[0].mxu0
        %v1984 = vadd.f32 0.0, %v1983
        %v1985 = vpop.f32.mrb[0].mxu0
        %v1986 = vpop.f32.mrb[0].mxu0
        %v1987 = vadd.f32 0.0, %v1986
        %v1988 = vpop.f32.mrb[0].mxu0
        %1989 = vmatprep.mubr.bf16.mxu0 0
        %1990 = vmatmul.mubr.bf16.gmra.mrb[0].mxu0 %v1938
        %v1991 = vpop.f32.mrb[0].mxu0
        %v1992 = vadd.f32 0.0, %v1991
        %v1993 = vpop.f32.mrb[0].mxu0
        %v1994 = vpop.f32.mrb[0].mxu0
        %v1995 = vadd.f32 0.0, %v1994
        %v1996 = vpop.f32.mrb[0].mxu0
        %1997 = vmatprep.mubr.bf16.mxu0 0
        %1998 = vmatmul.mubr.bf16.gmra.mrb[0].mxu0 %v1941
        %v1999 = vpop.f32.mrb[0].mxu0
        %v2000 = vadd.f32 0.0, %v1999
        %v2001 = vpop.f32.mrb[0].mxu0
        %v2002 = vpop.f32.mrb[0].mxu0
        %v2003 = vadd.f32 0.0, %v2002
        %v2004 = vpop.f32.mrb[0].mxu0
        %2005 = vmatprep.mubr.bf16.mxu0 0
        %2006 = vmatmul.mubr.bf16.gmra.mrb[0].mxu0 %v1944
        %v2007 = vpop.f32.mrb[0].mxu0
        %v2008 = vadd.f32 0.0, %v2007
        %v2009 = vpop.f32.mrb[0].mxu0
        %v2010 = vpop.f32.mrb[0].mxu0
        %v2011 = vadd.f32 0.0, %v2010
        %v2012 = vpop.f32.mrb[0].mxu0
        %2013 = vdwg.mxu0
        %v2014 = vadd.f32 %v1856, %v1984
        %v2015 = vadd.f32 %v1857, %v1987
        %v2016 = vadd.f32 %v1858, %v1992
        %v2017 = vadd.f32 %v1859, %v1995
        %v2018 = vadd.f32 %v1860, %v2000
        %v2019 = vadd.f32 %v1861, %v2003
        %v2020 = vadd.f32 %v1862, %v2008
        %v2021 = vadd.f32 %v1863, %v2011
        %2022 = vst [vmem:[%s167] sm:$0xff] %v2014
        %2023 = vst [vmem:[%s167 + $0x8] sm:$0xff] %v2015
        %2024 = vst [vmem:[%s167 + $0x10] sm:$0xff] %v2016
        %2025 = vst [vmem:[%s167 + $0x18] sm:$0xff] %v2017
        %2026 = vst [vmem:[%s167 + $0x20] sm:$0xff] %v2018
        %2027 = vst [vmem:[%s167 + $0x28] sm:$0xff] %v2019
        %2028 = vst [vmem:[%s167 + $0x30] sm:$0xff] %v2020
        %2029 = vst [vmem:[%s167 + $0x38] sm:$0xff] %v2021
        %v2030 = vadd.f32 %v2014, %v2015
        %v2031 = vadd.f32 %v2030, %v2016
        %v2032 = vadd.f32 %v2031, %v2017
        %v2033 = vadd.f32 %v2032, %v2018
        %v2034 = vadd.f32 %v2033, %v2019
        %v2035 = vadd.f32 %v2034, %v2020
        %v2036 = vadd.f32 %v2035, %v2021
        %v2037 = vrot.slane %v2036, 4
        %v2038 = vadd.f32 %v2036, %v2037
        %v2039 = vrot.slane %v2038, 2
        %v2040 = vadd.f32 %v2038, %v2039
        %v2041 = vrot.slane %v2040, 1
        %v2042 = vadd.f32 %v2040, %v2041
        %v2043 = vmul.f32 %v2042, 0.015625
        %v2044 = vsub.f32 %v2014, %v2043
        %v2045 = vsub.f32 %v2015, %v2043
        %v2046 = vsub.f32 %v2016, %v2043
        %v2047 = vsub.f32 %v2017, %v2043
        %v2048 = vsub.f32 %v2018, %v2043
        %v2049 = vsub.f32 %v2019, %v2043
        %v2050 = vsub.f32 %v2020, %v2043
        %v2051 = vsub.f32 %v2021, %v2043
        %v2052 = vmul.f32 %v2044, %v2044
        %v2053 = vmul.f32 %v2045, %v2045
        %v2054 = vmul.f32 %v2046, %v2046
        %v2055 = vmul.f32 %v2047, %v2047
        %v2056 = vmul.f32 %v2048, %v2048
        %v2057 = vmul.f32 %v2049, %v2049
        %v2058 = vmul.f32 %v2050, %v2050
        %v2059 = vmul.f32 %v2051, %v2051
        %v2060 = vadd.f32 %v2052, %v2053
        %v2061 = vadd.f32 %v2060, %v2054
        %v2062 = vadd.f32 %v2061, %v2055
        %v2063 = vadd.f32 %v2062, %v2056
        %v2064 = vadd.f32 %v2063, %v2057
        %v2065 = vadd.f32 %v2064, %v2058
        %v2066 = vadd.f32 %v2065, %v2059
        %v2067 = vrot.slane %v2066, 4
        %v2068 = vadd.f32 %v2066, %v2067
        %v2069 = vrot.slane %v2068, 2
        %v2070 = vadd.f32 %v2068, %v2069
        %v2071 = vrot.slane %v2070, 1
        %v2072 = vadd.f32 %v2070, %v2071
        %2073 = vst [vmem:[%s174] sm:$0x1] %v2043
        %2074 = vst [vmem:[%s174 + $0x1] sm:$0x1] %v2072
        %s2075 = sand.u32 %s76, 1
        %s2076 = scalar_lea.sflag [#allocation4], %s2075
        %s2077 = sand.u32 %s76, 1
        %s2078 = smul.addr %s2077, 64
        %s2079 = scalar_lea.vmem [#allocation3], %s2078
        %s2080 = sand.u32 %s102, 1
        %s2081 = scalar_lea.sflag [#allocation6], %s2080
        %s2082 = sand.u32 %s102, 1
        %s2083 = smul.addr %s2082, 2
        %s2084 = scalar_lea.vmem [#allocation5], %s2083
        // Predicated region
        $region29: #{tpu_custom_call.1} parent=27 // pred_check
          %p2085 = pneg %p86
        $region30: #{tpu_custom_call.1} parent=27 // pred_check_branch
          %2087 = sbr.rel (%p2085) target = $region32
        $region31: #{tpu_custom_call.1} parent=27 // pred_region
          %s2089 = ssub.s32 1024, 1024
          %2090 = vsyncadd %s2076, %s2089
          %s2091 = smul.addr %s21, 8
          %s2092 = smul.addr %s2091, 128
          %s2093 = scalar_lea.hbm %s2, %s2092
          %s2094 = sshll.u32 %s2079, 4
          %s2095 = int_to_ptr.vmem [resolvable:$true] %s2094
          %2100 = dma.vmem_to_hbm [thread:$0]  %s2095, 1024, %s2093, %s2076, 128, 128, 8
        $region32: #{tpu_custom_call.1} parent=27 // pred_fallthru
          _
        // Predicated region
        $region33: #{tpu_custom_call.1} parent=27 // pred_check
          %p2101 = pneg %p112
        $region34: #{tpu_custom_call.1} parent=27 // pred_check_branch
          %2103 = sbr.rel (%p2101) target = $region36
        $region35: #{tpu_custom_call.1} parent=27 // pred_region
          %s2105 = ssub.s32 32, 32
          %2106 = vsyncadd %s2081, %s2105
          %s2107 = smul.addr %s21, 32
          %s2108 = scalar_lea.hbm %s3, %s2107
          %s2110 = sshll.u32 %s2084, 4
          %s2111 = int_to_ptr.vmem [resolvable:$true] %s2110
          %2113 = dma.vmem_to_hbm [thread:$0]  %s2111, 32, %s2108, %s2081
        $region36: #{tpu_custom_call.1} parent=27 // pred_fallthru
          _
      $region28: #{tpu_custom_call.1} parent=5 // pred_fallthru
        _
      %p2114 = scmp.le.s32.totalorder 2, %s16
      // Predicated region
      $region37: #{tpu_custom_call.1} parent=5 // pred_check
        %p2115 = pneg %p2114
      $region38: #{tpu_custom_call.1} parent=5 // pred_check_branch
        %2117 = sbr.rel (%p2115) target = $region40
      $region39: #{tpu_custom_call.1} parent=5 // pred_region
        %s2118 = ssub.s32 %s16, 2
        // Predicated region
        $region41: #{tpu_custom_call.1} parent=39 // pred_check
          %p2119 = pneg %p92
        $region42: #{tpu_custom_call.1} parent=39 // pred_check_branch
          %2121 = sbr.rel (%p2119) target = $region44
        $region43: #{tpu_custom_call.1} parent=39 // pred_region
          %s2122 = sand.u32 %s77, 1
          %s2123 = scalar_lea.sflag [#allocation4], %s2122
          %s2124 = sand.u32 %s77, 1
          %s2125 = smul.addr %s2124, 64
          %s2126 = scalar_lea.vmem [#allocation3], %s2125
          %2127 = dma.done %s2123, 1024
        $region44: #{tpu_custom_call.1} parent=39 // pred_fallthru
          _
        // Predicated region
        $region45: #{tpu_custom_call.1} parent=39 // pred_check
          %p2128 = pneg %p118
        $region46: #{tpu_custom_call.1} parent=39 // pred_check_branch
          %2130 = sbr.rel (%p2128) target = $region48
        $region47: #{tpu_custom_call.1} parent=39 // pred_region
          %s2131 = sand.u32 %s103, 1
          %s2132 = scalar_lea.sflag [#allocation6], %s2131
          %s2133 = sand.u32 %s103, 1
          %s2134 = smul.addr %s2133, 2
          %s2135 = scalar_lea.vmem [#allocation5], %s2134
          %2136 = dma.done %s2132, 32
        $region48: #{tpu_custom_call.1} parent=39 // pred_fallthru
          _
      $region40: #{tpu_custom_call.1} parent=5 // pred_fallthru
        _
    $region6: #{tpu_custom_call.1} parent=1 // loop_footer
      %s20 = sadd.s32 1, %s16
    $region7: #{tpu_custom_call.1} parent=1 // loop_footer_branch
      %15 = sbr.rel target = $region3
    $region8: #{tpu_custom_call.1} parent=1 // loop_exit
      _
    %2137 = vsyncpa [#allocation4], 1
    %s2138 = scalar_lea.sflag [#allocation4], 1
    %2139 = vsyncpa %s2138, 1
    %2140 = vsyncpa [#allocation6], 1
    %s2141 = scalar_lea.sflag [#allocation6], 1
    %2142 = vsyncpa %s2141, 1

</llo_original>
